<compile_context>
chip_gen: v5e
topology: v5e:2x2
jax: 0.10.0
libtpu: 0.0.40
codegen_flags: <defaults>
</compile_context>

<pallas_src>
import functools

import jax
import jax.numpy as jnp
import numpy as np
from jax import lax
from jax.experimental import pallas as pl
from jax.experimental.pallas import tpu as pltpu

LANE = 128     # TPU lane width (last dim)
SUBLANE = 8    # f32 sublane width (second-to-last dim)


def _round_up(x: int, m: int) -> int:
    return ((x + m - 1) // m) * m


# -----------------------------------------------------------------------------
# Fused kernel: all RNN layers + NaN check + MLP head, one invocation (no grid)
# -----------------------------------------------------------------------------
def _fused_kernel(
    x_ref,        # (T, Bp, D)            time-major temporal input (batch padded, lanes NOT padded)
    static_ref,   # (Bp, Sp)              static features (zero padded)
    rnn_w_ref,    # (2L, Hp, Hp)          [2l] = W_ih^T, [2l+1] = W_hh^T (pre-transposed, zero padded)
    mlp_w_ref,    # (Sp+Hp+2*HSp, MW)     rows: [W1_static^T | W1_temporal^T | W2^T | W3^T]
    bias_ref,     # (L+3, BW)             rows: [b_ih+b_hh per layer | b1 | b2 | b3]
    out_ref,      # (Bp, Op)              final MLP output
    nan_ref,      # (1, Hp)               per-lane NaN counts of the final-layer sequence
    seq_ref,      # scratch: (T, Bp, Hp)  working sequence buffer (VMEM resident)
):
    T, Bp, Hp = seq_ref.shape
    D = x_ref.shape[2]
    Sp = static_ref.shape[1]
    L = rnn_w_ref.shape[0] // 2
    HSp = (mlp_w_ref.shape[0] - Sp - Hp) // 2
    Op = out_ref.shape[1]

    # ---- Static branch of the MLP head: independent of the recurrence, so the
    # scheduler can hide this matmul in MXU idle slots during the time loop. ----
    h1_static = (
        jnp.dot(static_ref[...], mlp_w_ref[0:Sp, 0:HSp],
                preferred_element_type=jnp.float32)
        + bias_ref[L:L + 1, 0:HSp]
    )

    # ---- Stage the temporal input into the padded sequence buffer (lane padding
    # happens here instead of in the wrapper -> no HBM write inflation). ----
    seq_ref[...] = jnp.zeros_like(seq_ref)
    seq_ref[:, :, 0:D] = x_ref[...]

    # ---- Multi-layer tanh RNN ----
    nan_acc = jnp.zeros((Bp, Hp), jnp.float32)
    h_last = None
    for layer in range(L):  # L is small and static -> unrolled at trace time
        w_ih = rnn_w_ref[2 * layer]
        w_hh_idx = 2 * layer + 1

        # Hoisted input projection + folded bias: ONE pipelined matmul per layer,
        # off the serial dependence chain.  In-place write-back into seq_ref is
        # safe (the full value is loaded before the store).
        pre = jnp.dot(seq_ref[...].reshape(T * Bp, Hp), w_ih,
                      preferred_element_type=jnp.float32)
        pre = pre + bias_ref[layer:layer + 1, 0:Hp]
        seq_ref[...] = pre.reshape(T, Bp, Hp)

        if layer < L - 1:
            def step(t, h, w_hh_idx=w_hh_idx):
                h_new = jnp.tanh(
                    seq_ref[t]
                    + jnp.dot(h, rnn_w_ref[w_hh_idx],
                              preferred_element_type=jnp.float32)
                )
                seq_ref[t] = h_new          # next layer consumes the full sequence
                return h_new

            lax.fori_loop(0, T, step, jnp.zeros((Bp, Hp), jnp.float32),
                          unroll=True)
        else:
            # Last layer: nothing downstream needs the stored sequence, so skip
            # the write-back and fuse the NaN accumulation into the recurrence.
            def step(t, carry, w_hh_idx=w_hh_idx):
                h, nacc = carry
                h_new = jnp.tanh(
                    seq_ref[t]
                    + jnp.dot(h, rnn_w_ref[w_hh_idx],
                              preferred_element_type=jnp.float32)
                )
                return h_new, nacc + jnp.isnan(h_new).astype(jnp.float32)

            h_last, nan_acc = lax.fori_loop(
                0, T, step,
                (jnp.zeros((Bp, Hp), jnp.float32), nan_acc),
                unroll=True,
            )

    # Per-lane NaN counts (mirrors torch.isnan(X_interm).sum() != 0 check).
    nan_ref[...] = jnp.sum(nan_acc, axis=0, keepdims=True)

    # ---- MLP head on [static | last hidden state]: the concat is folded into the
    # split first-layer weight (s @ W1s + h @ W1t). ----
    w1t = mlp_w_ref[Sp:Sp + Hp, 0:HSp]
    w2 = mlp_w_ref[Sp + Hp:Sp + Hp + HSp, 0:HSp]
    w3 = mlp_w_ref[Sp + Hp + HSp:Sp + Hp + 2 * HSp, 0:Op]

    h1 = jnp.maximum(
        h1_static + jnp.dot(h_last, w1t, preferred_element_type=jnp.float32),
        0.0,
    )
    h2 = jnp.maximum(
        jnp.dot(h1, w2, preferred_element_type=jnp.float32)
        + bias_ref[L + 1:L + 2, 0:HSp],
        0.0,
    )
    out_ref[...] = (
        jnp.dot(h2, w3, preferred_element_type=jnp.float32)
        + bias_ref[L + 2:L + 3, 0:Op]
    )


# -----------------------------------------------------------------------------
# Parameter construction (PyTorch-style uniform init) and kernel-ready packing
# -----------------------------------------------------------------------------
def _uniform(key, shape, bound):
    return jax.random.uniform(key, shape, jnp.float32, -bound, bound)


def init_params(
    key,
    n_static_units_in,
    n_temporal_units_in,
    n_units_out,
    n_static_units_hidden,
    n_static_layers_hidden,
    n_temporal_units_hidden,
    n_temporal_layers_hidden,
    window_size,
):
    """PyTorch-layout parameters (used by the reference and packed for the kernel)."""
    params = {"rnn": [], "mlp": None}
    H = n_temporal_units_hidden
    keys = jax.random.split(key, 4 * n_temporal_layers_hidden + 6)
    ki = 0
    for layer in range(n_temporal_layers_hidden):
        d_in = n_temporal_units_in if layer == 0 else H
        bound = 1.0 / np.sqrt(H)
        w_ih = _uniform(keys[ki], (H, d_in), bound); ki += 1
        w_hh = _uniform(keys[ki], (H, H), bound); ki += 1
        b_ih = _uniform(keys[ki], (1, H), bound); ki += 1
        b_hh = _uniform(keys[ki], (1, H), bound); ki += 1
        params["rnn"].append((w_ih, w_hh, b_ih, b_hh))
    # WindowLinearLayer -> MLP (n_static_layers_hidden = 2 hidden ReLU layers + linear out)
    n_in = n_static_units_in + H * window_size
    Hs = n_static_units_hidden
    w1 = _uniform(keys[ki], (Hs, n_in), 1.0 / np.sqrt(n_in)); ki += 1
    b1 = _uniform(keys[ki], (1, Hs), 1.0 / np.sqrt(n_in)); ki += 1
    w2 = _uniform(keys[ki], (Hs, Hs), 1.0 / np.sqrt(Hs)); ki += 1
    b2 = _uniform(keys[ki], (1, Hs), 1.0 / np.sqrt(Hs)); ki += 1
    w3 = _uniform(keys[ki], (n_units_out, Hs), 1.0 / np.sqrt(Hs)); ki += 1
    b3 = _uniform(keys[ki], (1, n_units_out), 1.0 / np.sqrt(Hs)); ki += 1
    params["mlp"] = (w1, b1, w2, b2, w3, b3)
    return params


def pack_params(params, n_static_units_in):
    """Pad to lane-dense (128-multiple) shapes, pre-transpose weights ((in, out) layout),
    fold RNN biases, and coalesce everything into 3 slabs (weights_rnn / weights_mlp / biases).

    Zero padding keeps padded hidden units exactly 0 (tanh(0)=0, relu(0)=0), so the padded
    computation matches the unpadded one bit-for-bit in the real lanes.
    """
    rnn = params["rnn"]
    L = len(rnn)
    H = rnn[0][0].shape[0]
    D = rnn[0][0].shape[1]
    Hp = _round_up(max(D, H), LANE)

    rnn_w = jnp.zeros((2 * L, Hp, Hp), jnp.float32)
    for l, (w_ih, w_hh, _b_ih, _b_hh) in enumerate(rnn):
        d_in = w_ih.shape[1]
        rnn_w = rnn_w.at[2 * l, :d_in, :H].set(w_ih.T)          # W_ih^T  (in, out)
        rnn_w = rnn_w.at[2 * l + 1, :H, :H].set(w_hh.T)         # W_hh^T  (in, out)

    w1, b1, w2, b2, w3, b3 = params["mlp"]
    S = n_static_units_in
    Hs = w1.shape[0]
    n_out = w3.shape[0]
    n_temp = w1.shape[1] - S                                    # = H * window_size
    Sp = _round_up(max(S, 1), LANE)
    HSp = _round_up(Hs, LANE)
    Op = _round_up(n_out, LANE)
    MW = max(HSp, Op)
    BW = max(Hp, MW)

    # MLP weight slab rows: [W1_static^T (Sp) | W1_temporal^T (Hp) | W2^T (HSp) | W3^T (HSp)]
    mlp_w = jnp.zeros((Sp + Hp + 2 * HSp, MW), jnp.float32)
    mlp_w = mlp_w.at[:S, :Hs].set(w1[:, :S].T)
    mlp_w = mlp_w.at[Sp:Sp + n_temp, :Hs].set(w1[:, S:].T)
    mlp_w = mlp_w.at[Sp + Hp:Sp + Hp + Hs, :Hs].set(w2.T)
    mlp_w = mlp_w.at[Sp + Hp + HSp:Sp + Hp + HSp + Hs, :n_out].set(w3.T)

    # Bias slab rows: [folded (b_ih+b_hh) per RNN layer | b1 | b2 | b3]
    bias = jnp.zeros((L + 3, BW), jnp.float32)
    for l, (_w_ih, _w_hh, b_ih, b_hh) in enumerate(rnn):
        bias = bias.at[l, :H].set((b_ih + b_hh).reshape(-1))
    bias = bias.at[L, :Hs].set(b1.reshape(-1))
    bias = bias.at[L + 1, :Hs].set(b2.reshape(-1))
    bias = bias.at[L + 2, :n_out].set(b3.reshape(-1))

    return dict(rnn_w=rnn_w, mlp_w=mlp_w, bias=bias)


# -----------------------------------------------------------------------------
# TimeSeriesLayer forward (mode='RNN', window_size=1)
# -----------------------------------------------------------------------------
@functools.partial(jax.jit, static_argnames=("n_units_out",))
def _forward_impl(packed, static_data, temporal_data, *, n_units_out):
    """Jittable: light batch pad + time-major transpose, one fused kernel, slice output."""
    B, T, D = temporal_data.shape
    S = static_data.shape[1]
    Hp = packed["rnn_w"].shape[1]
    Sp = _round_up(max(S, 1), LANE)
    Op = _round_up(n_units_out, LANE)
    Bp = _round_up(max(B, SUBLANE), SUBLANE)

    # Only the (cheap) batch pad + transpose stay in the wrapper; the expensive
    # lane padding of the tiny feature dim is done in-kernel into VMEM scratch.
    x = jnp.transpose(temporal_data.astype(jnp.float32), (1, 0, 2))   # (T, B, D)
    x = jnp.pad(x, ((0, 0), (0, Bp - B), (0, 0)))                     # (T, Bp, D)
    s = jnp.pad(static_data.astype(jnp.float32),
                ((0, Bp - B), (0, Sp - S)))                            # (Bp, Sp)

    vmem = pl.BlockSpec(memory_space=pltpu.MemorySpace.VMEM)
    out_pad, nan_row = pl.pallas_call(
        _fused_kernel,
        out_shape=(
            jax.ShapeDtypeStruct((Bp, Op), jnp.float32),
            jax.ShapeDtypeStruct((1, Hp), jnp.float32),
        ),
        in_specs=[vmem] * 5,
        out_specs=(vmem, vmem),
        scratch_shapes=[pltpu.VMEM((T, Bp, Hp), jnp.float32)],
    )(x, s, packed["rnn_w"], packed["mlp_w"], packed["bias"])

    return out_pad[:B, :n_units_out], jnp.sum(nan_row)


def timeseries_layer_forward(packed, static_data, temporal_data, n_units_out,
                             window_size=1, check_nan=True):
    """Public forward. static_data: (B, S); temporal_data: (B, T, D) batch-first."""
    if window_size != 1:
        # TODO(synk): general window_size > 1 (flatten of last W timesteps) is not fused yet.
        raise NotImplementedError("fused kernel supports window_size=1")
    out, nan_total = _forward_impl(packed, static_data, temporal_data,
                                   n_units_out=n_units_out)
    if check_nan:
        # Host-side raise AFTER the device result is materialized (mirrors the torch
        # RuntimeError).  Forces a device->host sync; pass check_nan=False in serving
        # loops where the sync dominates the few-microsecond kernel.
        if float(nan_total) != 0.0:
            raise RuntimeError("NaNs detected in the temporal embeddings")
    return out


# -----------------------------------------------------------------------------
# Pure-JAX reference for validation (unpadded, PyTorch-layout weights)
# -----------------------------------------------------------------------------
def _reference(params, static_data, temporal_data, window_size):
    B, T, D = temporal_data.shape
    x = temporal_data.astype(jnp.float32)
    for (w_ih, w_hh, b_ih, b_hh) in params["rnn"]:
        H = w_ih.shape[0]
        h = jnp.zeros((B, H), jnp.float32)
        outs = []
        for t in range(T):
            h = jnp.tanh(x[:, t, :] @ w_ih.T + h @ w_hh.T + b_ih + b_hh)
            outs.append(h)
        x = jnp.stack(outs, axis=1)
    temporal_batch = x[:, T - window_size:, :].reshape(B, -1)
    batch = jnp.concatenate([static_data.astype(jnp.float32), temporal_batch], axis=1)
    w1, b1, w2, b2, w3, b3 = params["mlp"]
    h = jnp.maximum(batch @ w1.T + b1, 0.0)
    h = jnp.maximum(h @ w2.T + b2, 0.0)
    return h @ w3.T + b3


if __name__ == "__main__":
    # Small shapes consistent with the module (mode='RNN', window_size=1)
    B = 2
    n_static_units_in = 4
    n_temporal_units_in = 6
    n_temporal_window = 8        # sequence length
    n_units_out = 3
    n_static_units_hidden = 32
    n_static_layers_hidden = 2
    n_temporal_units_hidden = 32
    n_temporal_layers_hidden = 2
    window_size = 1

    key = jax.random.PRNGKey(0)
    k_param, k_static, k_temporal = jax.random.split(key, 3)

    params = init_params(
        k_param,
        n_static_units_in,
        n_temporal_units_in,
        n_units_out,
        n_static_units_hidden,
        n_static_layers_hidden,
        n_temporal_units_hidden,
        n_temporal_layers_hidden,
        window_size,
    )
    packed = pack_params(params, n_static_units_in)

    static_data = jax.random.normal(k_static, (B, n_static_units_in), jnp.float32)
    temporal_data = jax.random.normal(
        k_temporal, (B, n_temporal_window, n_temporal_units_in), jnp.float32
    )

    out = timeseries_layer_forward(packed, static_data, temporal_data, n_units_out, window_size)
    out = jax.block_until_ready(out)

    ref = _reference(params, static_data, temporal_data, window_size)
    if not np.allclose(np.asarray(out), np.asarray(ref), atol=1e-4, rtol=1e-4):
        raise RuntimeError("Pallas kernel output mismatch vs reference")

    # TODO(synk): dropout (p=0 default) is a no-op here; non-RNN modes (LSTM/GRU/TCN/
    # Transformer/...) of TimeSeriesLayer are out of scope; bf16 weight/activation cast
    # (v6e/v7x) is skipped to keep exact f32 parity with the reference at these tiny sizes.
    print("KERNEL_OK")
</pallas_src>

<mosaic_0001>
module attributes {stable_mosaic.version = 11 : i64} {
  func.func @_fused_kernel(%arg0: memref<8x8x6xf32, #tpu.memory_space<vmem>>, %arg1: memref<8x128xf32, #tpu.memory_space<vmem>>, %arg2: memref<4x128x128xf32, #tpu.memory_space<vmem>>, %arg3: memref<512x128xf32, #tpu.memory_space<vmem>>, %arg4: memref<5x128xf32, #tpu.memory_space<vmem>>, %arg5: memref<8x128xf32, #tpu.memory_space<vmem>>, %arg6: memref<1x128xf32, #tpu.memory_space<vmem>>, %arg7: memref<8x8x128xf32, #tpu.memory_space<vmem>>) attributes {dimension_semantics = [], scalar_prefetch = 0 : i64, scratch_operands = 1 : i64, tpu.core_type = #tpu.core_type<tc>} {
    %c0 = arith.constant 0 : index
    %c0_0 = arith.constant 0 : index
    %0 = vector.load %arg1[%c0, %c0_0] : memref<8x128xf32, #tpu.memory_space<vmem>>, vector<8x128xf32>
    %c0_1 = arith.constant 0 : index
    %c0_2 = arith.constant 0 : index
    %1 = vector.load %arg3[%c0_1, %c0_2] : memref<512x128xf32, #tpu.memory_space<vmem>>, vector<128x128xf32>
    %cst = arith.constant dense<0.000000e+00> : vector<8x128xf32>
    %2 = tpu.matmul %0, %1, %cst {dimension_numbers = #tpu.dot_dimension_numbers<[1], [0], [0], [1], [0, 0, 1, 1], [], []>} : vector<8x128xf32>, vector<128x128xf32>, vector<8x128xf32> -> vector<8x128xf32>
    %c2 = arith.constant 2 : index
    %c0_3 = arith.constant 0 : index
    %3 = vector.load %arg4[%c2, %c0_3] : memref<5x128xf32, #tpu.memory_space<vmem>>, vector<1x128xf32>
    %4 = vector.broadcast %3 : vector<1x128xf32> to vector<8x128xf32>
    %5 = arith.addf %2, %4 : vector<8x128xf32>
    %cst_4 = arith.constant 0.000000e+00 : f32
    %6 = vector.broadcast %cst_4 : f32 to vector<8x8x128xf32>
    %c0_5 = arith.constant 0 : index
    %c0_6 = arith.constant 0 : index
    %c0_7 = arith.constant 0 : index
    %7 = vector.load %arg7[%c0_5, %c0_6, %c0_7] : memref<8x8x128xf32, #tpu.memory_space<vmem>>, vector<8x8x128xf32>
    tpu.vector_store %arg7[%c0_5, %c0_6, %c0_7], %6 {strides = array<i32>} : memref<8x8x128xf32, #tpu.memory_space<vmem>>, vector<8x8x128xf32>,
    %c0_8 = arith.constant 0 : index
    %c0_9 = arith.constant 0 : index
    %c0_10 = arith.constant 0 : index
    %8 = vector.load %arg0[%c0_8, %c0_9, %c0_10] : memref<8x8x6xf32, #tpu.memory_space<vmem>>, vector<8x8x6xf32>
    %c0_11 = arith.constant 0 : index
    %c0_12 = arith.constant 0 : index
    %c0_13 = arith.constant 0 : index
    %9 = vector.load %arg7[%c0_11, %c0_12, %c0_13] : memref<8x8x128xf32, #tpu.memory_space<vmem>>, vector<8x8x6xf32>
    tpu.vector_store %arg7[%c0_11, %c0_12, %c0_13], %8 {strides = array<i32>} : memref<8x8x128xf32, #tpu.memory_space<vmem>>, vector<8x8x6xf32>,
    %cst_14 = arith.constant 0.000000e+00 : f32
    %10 = vector.broadcast %cst_14 : f32 to vector<8x128xf32>
    %c0_15 = arith.constant 0 : index
    %c0_16 = arith.constant 0 : index
    %c0_17 = arith.constant 0 : index
    %11 = vector.load %arg2[%c0_15, %c0_16, %c0_17] : memref<4x128x128xf32, #tpu.memory_space<vmem>>, vector<1x128x128xf32>
    %12 = vector.shape_cast %11 : vector<1x128x128xf32> to vector<128x128xf32>
    %c0_18 = arith.constant 0 : index
    %c0_19 = arith.constant 0 : index
    %c0_20 = arith.constant 0 : index
    %13 = vector.load %arg7[%c0_18, %c0_19, %c0_20] : memref<8x8x128xf32, #tpu.memory_space<vmem>>, vector<8x8x128xf32>
    %14 = vector.shape_cast %13 : vector<8x8x128xf32> to vector<64x128xf32>
    %cst_21 = arith.constant dense<0.000000e+00> : vector<64x128xf32>
    %15 = tpu.matmul %14, %12, %cst_21 {dimension_numbers = #tpu.dot_dimension_numbers<[1], [0], [0], [1], [0, 0, 1, 1], [], []>} : vector<64x128xf32>, vector<128x128xf32>, vector<64x128xf32> -> vector<64x128xf32>
    %c0_22 = arith.constant 0 : index
    %c0_23 = arith.constant 0 : index
    %16 = vector.load %arg4[%c0_22, %c0_23] : memref<5x128xf32, #tpu.memory_space<vmem>>, vector<1x128xf32>
    %17 = vector.broadcast %16 : vector<1x128xf32> to vector<64x128xf32>
    %18 = arith.addf %15, %17 : vector<64x128xf32>
    %19 = vector.shape_cast %18 : vector<64x128xf32> to vector<8x8x128xf32>
    %c0_24 = arith.constant 0 : index
    %c0_25 = arith.constant 0 : index
    %c0_26 = arith.constant 0 : index
    %20 = vector.load %arg7[%c0_24, %c0_25, %c0_26] : memref<8x8x128xf32, #tpu.memory_space<vmem>>, vector<8x8x128xf32>
    tpu.vector_store %arg7[%c0_24, %c0_25, %c0_26], %19 {strides = array<i32>} : memref<8x8x128xf32, #tpu.memory_space<vmem>>, vector<8x8x128xf32>,
    %cst_27 = arith.constant 0.000000e+00 : f32
    %21 = vector.broadcast %cst_27 : f32 to vector<8x128xf32>
    %c0_i32 = arith.constant 0 : i32
    %22 = arith.index_cast %c0_i32 : i32 to index
    %c0_28 = arith.constant 0 : index
    %c0_29 = arith.constant 0 : index
    %23 = vector.load %arg7[%22, %c0_28, %c0_29] : memref<8x8x128xf32, #tpu.memory_space<vmem>>, vector<1x8x128xf32>
    %24 = vector.shape_cast %23 : vector<1x8x128xf32> to vector<8x128xf32>
    %c1 = arith.constant 1 : index
    %c0_30 = arith.constant 0 : index
    %c0_31 = arith.constant 0 : index
    %25 = vector.load %arg2[%c1, %c0_30, %c0_31] : memref<4x128x128xf32, #tpu.memory_space<vmem>>, vector<1x128x128xf32>
    %26 = vector.shape_cast %25 : vector<1x128x128xf32> to vector<128x128xf32>
    %cst_32 = arith.constant dense<0.000000e+00> : vector<8x128xf32>
    %27 = tpu.matmul %21, %26, %cst_32 {dimension_numbers = #tpu.dot_dimension_numbers<[1], [0], [0], [1], [0, 0, 1, 1], [], []>} : vector<8x128xf32>, vector<128x128xf32>, vector<8x128xf32> -> vector<8x128xf32>
    %28 = arith.addf %24, %27 : vector<8x128xf32>
    %29 = math.tanh %28 : vector<8x128xf32>
    %30 = arith.index_cast %c0_i32 : i32 to index
    %c0_33 = arith.constant 0 : index
    %c0_34 = arith.constant 0 : index
    %31 = vector.load %arg7[%30, %c0_33, %c0_34] : memref<8x8x128xf32, #tpu.memory_space<vmem>>, vector<1x8x128xf32>
    %32 = vector.shape_cast %31 : vector<1x8x128xf32> to vector<8x128xf32>
    %33 = vector.shape_cast %29 : vector<8x128xf32> to vector<1x8x128xf32>
    tpu.vector_store %arg7[%30, %c0_33, %c0_34], %33 {strides = array<i32>} : memref<8x8x128xf32, #tpu.memory_space<vmem>>, vector<1x8x128xf32>,
    %c1_i32 = arith.constant 1 : i32
    %34 = arith.index_cast %c1_i32 : i32 to index
    %c0_35 = arith.constant 0 : index
    %c0_36 = arith.constant 0 : index
    %35 = vector.load %arg7[%34, %c0_35, %c0_36] : memref<8x8x128xf32, #tpu.memory_space<vmem>>, vector<1x8x128xf32>
    %36 = vector.shape_cast %35 : vector<1x8x128xf32> to vector<8x128xf32>
    %c1_37 = arith.constant 1 : index
    %c0_38 = arith.constant 0 : index
    %c0_39 = arith.constant 0 : index
    %37 = vector.load %arg2[%c1_37, %c0_38, %c0_39] : memref<4x128x128xf32, #tpu.memory_space<vmem>>, vector<1x128x128xf32>
    %38 = vector.shape_cast %37 : vector<1x128x128xf32> to vector<128x128xf32>
    %cst_40 = arith.constant dense<0.000000e+00> : vector<8x128xf32>
    %39 = tpu.matmul %29, %38, %cst_40 {dimension_numbers = #tpu.dot_dimension_numbers<[1], [0], [0], [1], [0, 0, 1, 1], [], []>} : vector<8x128xf32>, vector<128x128xf32>, vector<8x128xf32> -> vector<8x128xf32>
    %40 = arith.addf %36, %39 : vector<8x128xf32>
    %41 = math.tanh %40 : vector<8x128xf32>
    %42 = arith.index_cast %c1_i32 : i32 to index
    %c0_41 = arith.constant 0 : index
    %c0_42 = arith.constant 0 : index
    %43 = vector.load %arg7[%42, %c0_41, %c0_42] : memref<8x8x128xf32, #tpu.memory_space<vmem>>, vector<1x8x128xf32>
    %44 = vector.shape_cast %43 : vector<1x8x128xf32> to vector<8x128xf32>
    %45 = vector.shape_cast %41 : vector<8x128xf32> to vector<1x8x128xf32>
    tpu.vector_store %arg7[%42, %c0_41, %c0_42], %45 {strides = array<i32>} : memref<8x8x128xf32, #tpu.memory_space<vmem>>, vector<1x8x128xf32>,
    %c2_i32 = arith.constant 2 : i32
    %46 = arith.index_cast %c2_i32 : i32 to index
    %c0_43 = arith.constant 0 : index
    %c0_44 = arith.constant 0 : index
    %47 = vector.load %arg7[%46, %c0_43, %c0_44] : memref<8x8x128xf32, #tpu.memory_space<vmem>>, vector<1x8x128xf32>
    %48 = vector.shape_cast %47 : vector<1x8x128xf32> to vector<8x128xf32>
    %c1_45 = arith.constant 1 : index
    %c0_46 = arith.constant 0 : index
    %c0_47 = arith.constant 0 : index
    %49 = vector.load %arg2[%c1_45, %c0_46, %c0_47] : memref<4x128x128xf32, #tpu.memory_space<vmem>>, vector<1x128x128xf32>
    %50 = vector.shape_cast %49 : vector<1x128x128xf32> to vector<128x128xf32>
    %cst_48 = arith.constant dense<0.000000e+00> : vector<8x128xf32>
    %51 = tpu.matmul %41, %50, %cst_48 {dimension_numbers = #tpu.dot_dimension_numbers<[1], [0], [0], [1], [0, 0, 1, 1], [], []>} : vector<8x128xf32>, vector<128x128xf32>, vector<8x128xf32> -> vector<8x128xf32>
    %52 = arith.addf %48, %51 : vector<8x128xf32>
    %53 = math.tanh %52 : vector<8x128xf32>
    %54 = arith.index_cast %c2_i32 : i32 to index
    %c0_49 = arith.constant 0 : index
    %c0_50 = arith.constant 0 : index
    %55 = vector.load %arg7[%54, %c0_49, %c0_50] : memref<8x8x128xf32, #tpu.memory_space<vmem>>, vector<1x8x128xf32>
    %56 = vector.shape_cast %55 : vector<1x8x128xf32> to vector<8x128xf32>
    %57 = vector.shape_cast %53 : vector<8x128xf32> to vector<1x8x128xf32>
    tpu.vector_store %arg7[%54, %c0_49, %c0_50], %57 {strides = array<i32>} : memref<8x8x128xf32, #tpu.memory_space<vmem>>, vector<1x8x128xf32>,
    %c3_i32 = arith.constant 3 : i32
    %58 = arith.index_cast %c3_i32 : i32 to index
    %c0_51 = arith.constant 0 : index
    %c0_52 = arith.constant 0 : index
    %59 = vector.load %arg7[%58, %c0_51, %c0_52] : memref<8x8x128xf32, #tpu.memory_space<vmem>>, vector<1x8x128xf32>
    %60 = vector.shape_cast %59 : vector<1x8x128xf32> to vector<8x128xf32>
    %c1_53 = arith.constant 1 : index
    %c0_54 = arith.constant 0 : index
    %c0_55 = arith.constant 0 : index
    %61 = vector.load %arg2[%c1_53, %c0_54, %c0_55] : memref<4x128x128xf32, #tpu.memory_space<vmem>>, vector<1x128x128xf32>
    %62 = vector.shape_cast %61 : vector<1x128x128xf32> to vector<128x128xf32>
    %cst_56 = arith.constant dense<0.000000e+00> : vector<8x128xf32>
    %63 = tpu.matmul %53, %62, %cst_56 {dimension_numbers = #tpu.dot_dimension_numbers<[1], [0], [0], [1], [0, 0, 1, 1], [], []>} : vector<8x128xf32>, vector<128x128xf32>, vector<8x128xf32> -> vector<8x128xf32>
    %64 = arith.addf %60, %63 : vector<8x128xf32>
    %65 = math.tanh %64 : vector<8x128xf32>
    %66 = arith.index_cast %c3_i32 : i32 to index
    %c0_57 = arith.constant 0 : index
    %c0_58 = arith.constant 0 : index
    %67 = vector.load %arg7[%66, %c0_57, %c0_58] : memref<8x8x128xf32, #tpu.memory_space<vmem>>, vector<1x8x128xf32>
    %68 = vector.shape_cast %67 : vector<1x8x128xf32> to vector<8x128xf32>
    %69 = vector.shape_cast %65 : vector<8x128xf32> to vector<1x8x128xf32>
    tpu.vector_store %arg7[%66, %c0_57, %c0_58], %69 {strides = array<i32>} : memref<8x8x128xf32, #tpu.memory_space<vmem>>, vector<1x8x128xf32>,
    %c4_i32 = arith.constant 4 : i32
    %70 = arith.index_cast %c4_i32 : i32 to index
    %c0_59 = arith.constant 0 : index
    %c0_60 = arith.constant 0 : index
    %71 = vector.load %arg7[%70, %c0_59, %c0_60] : memref<8x8x128xf32, #tpu.memory_space<vmem>>, vector<1x8x128xf32>
    %72 = vector.shape_cast %71 : vector<1x8x128xf32> to vector<8x128xf32>
    %c1_61 = arith.constant 1 : index
    %c0_62 = arith.constant 0 : index
    %c0_63 = arith.constant 0 : index
    %73 = vector.load %arg2[%c1_61, %c0_62, %c0_63] : memref<4x128x128xf32, #tpu.memory_space<vmem>>, vector<1x128x128xf32>
    %74 = vector.shape_cast %73 : vector<1x128x128xf32> to vector<128x128xf32>
    %cst_64 = arith.constant dense<0.000000e+00> : vector<8x128xf32>
    %75 = tpu.matmul %65, %74, %cst_64 {dimension_numbers = #tpu.dot_dimension_numbers<[1], [0], [0], [1], [0, 0, 1, 1], [], []>} : vector<8x128xf32>, vector<128x128xf32>, vector<8x128xf32> -> vector<8x128xf32>
    %76 = arith.addf %72, %75 : vector<8x128xf32>
    %77 = math.tanh %76 : vector<8x128xf32>
    %78 = arith.index_cast %c4_i32 : i32 to index
    %c0_65 = arith.constant 0 : index
    %c0_66 = arith.constant 0 : index
    %79 = vector.load %arg7[%78, %c0_65, %c0_66] : memref<8x8x128xf32, #tpu.memory_space<vmem>>, vector<1x8x128xf32>
    %80 = vector.shape_cast %79 : vector<1x8x128xf32> to vector<8x128xf32>
    %81 = vector.shape_cast %77 : vector<8x128xf32> to vector<1x8x128xf32>
    tpu.vector_store %arg7[%78, %c0_65, %c0_66], %81 {strides = array<i32>} : memref<8x8x128xf32, #tpu.memory_space<vmem>>, vector<1x8x128xf32>,
    %c5_i32 = arith.constant 5 : i32
    %82 = arith.index_cast %c5_i32 : i32 to index
    %c0_67 = arith.constant 0 : index
    %c0_68 = arith.constant 0 : index
    %83 = vector.load %arg7[%82, %c0_67, %c0_68] : memref<8x8x128xf32, #tpu.memory_space<vmem>>, vector<1x8x128xf32>
    %84 = vector.shape_cast %83 : vector<1x8x128xf32> to vector<8x128xf32>
    %c1_69 = arith.constant 1 : index
    %c0_70 = arith.constant 0 : index
    %c0_71 = arith.constant 0 : index
    %85 = vector.load %arg2[%c1_69, %c0_70, %c0_71] : memref<4x128x128xf32, #tpu.memory_space<vmem>>, vector<1x128x128xf32>
    %86 = vector.shape_cast %85 : vector<1x128x128xf32> to vector<128x128xf32>
    %cst_72 = arith.constant dense<0.000000e+00> : vector<8x128xf32>
    %87 = tpu.matmul %77, %86, %cst_72 {dimension_numbers = #tpu.dot_dimension_numbers<[1], [0], [0], [1], [0, 0, 1, 1], [], []>} : vector<8x128xf32>, vector<128x128xf32>, vector<8x128xf32> -> vector<8x128xf32>
    %88 = arith.addf %84, %87 : vector<8x128xf32>
    %89 = math.tanh %88 : vector<8x128xf32>
    %90 = arith.index_cast %c5_i32 : i32 to index
    %c0_73 = arith.constant 0 : index
    %c0_74 = arith.constant 0 : index
    %91 = vector.load %arg7[%90, %c0_73, %c0_74] : memref<8x8x128xf32, #tpu.memory_space<vmem>>, vector<1x8x128xf32>
    %92 = vector.shape_cast %91 : vector<1x8x128xf32> to vector<8x128xf32>
    %93 = vector.shape_cast %89 : vector<8x128xf32> to vector<1x8x128xf32>
    tpu.vector_store %arg7[%90, %c0_73, %c0_74], %93 {strides = array<i32>} : memref<8x8x128xf32, #tpu.memory_space<vmem>>, vector<1x8x128xf32>,
    %c6_i32 = arith.constant 6 : i32
    %94 = arith.index_cast %c6_i32 : i32 to index
    %c0_75 = arith.constant 0 : index
    %c0_76 = arith.constant 0 : index
    %95 = vector.load %arg7[%94, %c0_75, %c0_76] : memref<8x8x128xf32, #tpu.memory_space<vmem>>, vector<1x8x128xf32>
    %96 = vector.shape_cast %95 : vector<1x8x128xf32> to vector<8x128xf32>
    %c1_77 = arith.constant 1 : index
    %c0_78 = arith.constant 0 : index
    %c0_79 = arith.constant 0 : index
    %97 = vector.load %arg2[%c1_77, %c0_78, %c0_79] : memref<4x128x128xf32, #tpu.memory_space<vmem>>, vector<1x128x128xf32>
    %98 = vector.shape_cast %97 : vector<1x128x128xf32> to vector<128x128xf32>
    %cst_80 = arith.constant dense<0.000000e+00> : vector<8x128xf32>
    %99 = tpu.matmul %89, %98, %cst_80 {dimension_numbers = #tpu.dot_dimension_numbers<[1], [0], [0], [1], [0, 0, 1, 1], [], []>} : vector<8x128xf32>, vector<128x128xf32>, vector<8x128xf32> -> vector<8x128xf32>
    %100 = arith.addf %96, %99 : vector<8x128xf32>
    %101 = math.tanh %100 : vector<8x128xf32>
    %102 = arith.index_cast %c6_i32 : i32 to index
    %c0_81 = arith.constant 0 : index
    %c0_82 = arith.constant 0 : index
    %103 = vector.load %arg7[%102, %c0_81, %c0_82] : memref<8x8x128xf32, #tpu.memory_space<vmem>>, vector<1x8x128xf32>
    %104 = vector.shape_cast %103 : vector<1x8x128xf32> to vector<8x128xf32>
    %105 = vector.shape_cast %101 : vector<8x128xf32> to vector<1x8x128xf32>
    tpu.vector_store %arg7[%102, %c0_81, %c0_82], %105 {strides = array<i32>} : memref<8x8x128xf32, #tpu.memory_space<vmem>>, vector<1x8x128xf32>,
    %c7_i32 = arith.constant 7 : i32
    %106 = arith.index_cast %c7_i32 : i32 to index
    %c0_83 = arith.constant 0 : index
    %c0_84 = arith.constant 0 : index
    %107 = vector.load %arg7[%106, %c0_83, %c0_84] : memref<8x8x128xf32, #tpu.memory_space<vmem>>, vector<1x8x128xf32>
    %108 = vector.shape_cast %107 : vector<1x8x128xf32> to vector<8x128xf32>
    %c1_85 = arith.constant 1 : index
    %c0_86 = arith.constant 0 : index
    %c0_87 = arith.constant 0 : index
    %109 = vector.load %arg2[%c1_85, %c0_86, %c0_87] : memref<4x128x128xf32, #tpu.memory_space<vmem>>, vector<1x128x128xf32>
    %110 = vector.shape_cast %109 : vector<1x128x128xf32> to vector<128x128xf32>
    %cst_88 = arith.constant dense<0.000000e+00> : vector<8x128xf32>
    %111 = tpu.matmul %101, %110, %cst_88 {dimension_numbers = #tpu.dot_dimension_numbers<[1], [0], [0], [1], [0, 0, 1, 1], [], []>} : vector<8x128xf32>, vector<128x128xf32>, vector<8x128xf32> -> vector<8x128xf32>
    %112 = arith.addf %108, %111 : vector<8x128xf32>
    %113 = math.tanh %112 : vector<8x128xf32>
    %114 = arith.index_cast %c7_i32 : i32 to index
    %c0_89 = arith.constant 0 : index
    %c0_90 = arith.constant 0 : index
    %115 = vector.load %arg7[%114, %c0_89, %c0_90] : memref<8x8x128xf32, #tpu.memory_space<vmem>>, vector<1x8x128xf32>
    %116 = vector.shape_cast %115 : vector<1x8x128xf32> to vector<8x128xf32>
    %117 = vector.shape_cast %113 : vector<8x128xf32> to vector<1x8x128xf32>
    tpu.vector_store %arg7[%114, %c0_89, %c0_90], %117 {strides = array<i32>} : memref<8x8x128xf32, #tpu.memory_space<vmem>>, vector<1x8x128xf32>,
    %c8_i32 = arith.constant 8 : i32
    %c2_91 = arith.constant 2 : index
    %c0_92 = arith.constant 0 : index
    %c0_93 = arith.constant 0 : index
    %118 = vector.load %arg2[%c2_91, %c0_92, %c0_93] : memref<4x128x128xf32, #tpu.memory_space<vmem>>, vector<1x128x128xf32>
    %119 = vector.shape_cast %118 : vector<1x128x128xf32> to vector<128x128xf32>
    %c0_94 = arith.constant 0 : index
    %c0_95 = arith.constant 0 : index
    %c0_96 = arith.constant 0 : index
    %120 = vector.load %arg7[%c0_94, %c0_95, %c0_96] : memref<8x8x128xf32, #tpu.memory_space<vmem>>, vector<8x8x128xf32>
    %121 = vector.shape_cast %120 : vector<8x8x128xf32> to vector<64x128xf32>
    %cst_97 = arith.constant dense<0.000000e+00> : vector<64x128xf32>
    %122 = tpu.matmul %121, %119, %cst_97 {dimension_numbers = #tpu.dot_dimension_numbers<[1], [0], [0], [1], [0, 0, 1, 1], [], []>} : vector<64x128xf32>, vector<128x128xf32>, vector<64x128xf32> -> vector<64x128xf32>
    %c1_98 = arith.constant 1 : index
    %c0_99 = arith.constant 0 : index
    %123 = vector.load %arg4[%c1_98, %c0_99] : memref<5x128xf32, #tpu.memory_space<vmem>>, vector<1x128xf32>
    %124 = vector.broadcast %123 : vector<1x128xf32> to vector<64x128xf32>
    %125 = arith.addf %122, %124 : vector<64x128xf32>
    %126 = vector.shape_cast %125 : vector<64x128xf32> to vector<8x8x128xf32>
    %c0_100 = arith.constant 0 : index
    %c0_101 = arith.constant 0 : index
    %c0_102 = arith.constant 0 : index
    %127 = vector.load %arg7[%c0_100, %c0_101, %c0_102] : memref<8x8x128xf32, #tpu.memory_space<vmem>>, vector<8x8x128xf32>
    tpu.vector_store %arg7[%c0_100, %c0_101, %c0_102], %126 {strides = array<i32>} : memref<8x8x128xf32, #tpu.memory_space<vmem>>, vector<8x8x128xf32>,
    %cst_103 = arith.constant 0.000000e+00 : f32
    %128 = vector.broadcast %cst_103 : f32 to vector<8x128xf32>
    %c0_i32_104 = arith.constant 0 : i32
    %129 = arith.index_cast %c0_i32_104 : i32 to index
    %c0_105 = arith.constant 0 : index
    %c0_106 = arith.constant 0 : index
    %130 = vector.load %arg7[%129, %c0_105, %c0_106] : memref<8x8x128xf32, #tpu.memory_space<vmem>>, vector<1x8x128xf32>
    %131 = vector.shape_cast %130 : vector<1x8x128xf32> to vector<8x128xf32>
    %c3 = arith.constant 3 : index
    %c0_107 = arith.constant 0 : index
    %c0_108 = arith.constant 0 : index
    %132 = vector.load %arg2[%c3, %c0_107, %c0_108] : memref<4x128x128xf32, #tpu.memory_space<vmem>>, vector<1x128x128xf32>
    %133 = vector.shape_cast %132 : vector<1x128x128xf32> to vector<128x128xf32>
    %cst_109 = arith.constant dense<0.000000e+00> : vector<8x128xf32>
    %134 = tpu.matmul %128, %133, %cst_109 {dimension_numbers = #tpu.dot_dimension_numbers<[1], [0], [0], [1], [0, 0, 1, 1], [], []>} : vector<8x128xf32>, vector<128x128xf32>, vector<8x128xf32> -> vector<8x128xf32>
    %135 = arith.addf %131, %134 : vector<8x128xf32>
    %136 = math.tanh %135 : vector<8x128xf32>
    %137 = arith.cmpf one, %136, %136 : vector<8x128xf32>
    %138 = arith.extui %137 : vector<8x128xi1> to vector<8x128xi32>
    %139 = arith.sitofp %138 : vector<8x128xi32> to vector<8x128xf32>
    %140 = arith.addf %10, %139 : vector<8x128xf32>
    %c1_i32_110 = arith.constant 1 : i32
    %141 = arith.index_cast %c1_i32_110 : i32 to index
    %c0_111 = arith.constant 0 : index
    %c0_112 = arith.constant 0 : index
    %142 = vector.load %arg7[%141, %c0_111, %c0_112] : memref<8x8x128xf32, #tpu.memory_space<vmem>>, vector<1x8x128xf32>
    %143 = vector.shape_cast %142 : vector<1x8x128xf32> to vector<8x128xf32>
    %c3_113 = arith.constant 3 : index
    %c0_114 = arith.constant 0 : index
    %c0_115 = arith.constant 0 : index
    %144 = vector.load %arg2[%c3_113, %c0_114, %c0_115] : memref<4x128x128xf32, #tpu.memory_space<vmem>>, vector<1x128x128xf32>
    %145 = vector.shape_cast %144 : vector<1x128x128xf32> to vector<128x128xf32>
    %cst_116 = arith.constant dense<0.000000e+00> : vector<8x128xf32>
    %146 = tpu.matmul %136, %145, %cst_116 {dimension_numbers = #tpu.dot_dimension_numbers<[1], [0], [0], [1], [0, 0, 1, 1], [], []>} : vector<8x128xf32>, vector<128x128xf32>, vector<8x128xf32> -> vector<8x128xf32>
    %147 = arith.addf %143, %146 : vector<8x128xf32>
    %148 = math.tanh %147 : vector<8x128xf32>
    %149 = arith.cmpf one, %148, %148 : vector<8x128xf32>
    %150 = arith.extui %149 : vector<8x128xi1> to vector<8x128xi32>
    %151 = arith.sitofp %150 : vector<8x128xi32> to vector<8x128xf32>
    %152 = arith.addf %140, %151 : vector<8x128xf32>
    %c2_i32_117 = arith.constant 2 : i32
    %153 = arith.index_cast %c2_i32_117 : i32 to index
    %c0_118 = arith.constant 0 : index
    %c0_119 = arith.constant 0 : index
    %154 = vector.load %arg7[%153, %c0_118, %c0_119] : memref<8x8x128xf32, #tpu.memory_space<vmem>>, vector<1x8x128xf32>
    %155 = vector.shape_cast %154 : vector<1x8x128xf32> to vector<8x128xf32>
    %c3_120 = arith.constant 3 : index
    %c0_121 = arith.constant 0 : index
    %c0_122 = arith.constant 0 : index
    %156 = vector.load %arg2[%c3_120, %c0_121, %c0_122] : memref<4x128x128xf32, #tpu.memory_space<vmem>>, vector<1x128x128xf32>
    %157 = vector.shape_cast %156 : vector<1x128x128xf32> to vector<128x128xf32>
    %cst_123 = arith.constant dense<0.000000e+00> : vector<8x128xf32>
    %158 = tpu.matmul %148, %157, %cst_123 {dimension_numbers = #tpu.dot_dimension_numbers<[1], [0], [0], [1], [0, 0, 1, 1], [], []>} : vector<8x128xf32>, vector<128x128xf32>, vector<8x128xf32> -> vector<8x128xf32>
    %159 = arith.addf %155, %158 : vector<8x128xf32>
    %160 = math.tanh %159 : vector<8x128xf32>
    %161 = arith.cmpf one, %160, %160 : vector<8x128xf32>
    %162 = arith.extui %161 : vector<8x128xi1> to vector<8x128xi32>
    %163 = arith.sitofp %162 : vector<8x128xi32> to vector<8x128xf32>
    %164 = arith.addf %152, %163 : vector<8x128xf32>
    %c3_i32_124 = arith.constant 3 : i32
    %165 = arith.index_cast %c3_i32_124 : i32 to index
    %c0_125 = arith.constant 0 : index
    %c0_126 = arith.constant 0 : index
    %166 = vector.load %arg7[%165, %c0_125, %c0_126] : memref<8x8x128xf32, #tpu.memory_space<vmem>>, vector<1x8x128xf32>
    %167 = vector.shape_cast %166 : vector<1x8x128xf32> to vector<8x128xf32>
    %c3_127 = arith.constant 3 : index
    %c0_128 = arith.constant 0 : index
    %c0_129 = arith.constant 0 : index
    %168 = vector.load %arg2[%c3_127, %c0_128, %c0_129] : memref<4x128x128xf32, #tpu.memory_space<vmem>>, vector<1x128x128xf32>
    %169 = vector.shape_cast %168 : vector<1x128x128xf32> to vector<128x128xf32>
    %cst_130 = arith.constant dense<0.000000e+00> : vector<8x128xf32>
    %170 = tpu.matmul %160, %169, %cst_130 {dimension_numbers = #tpu.dot_dimension_numbers<[1], [0], [0], [1], [0, 0, 1, 1], [], []>} : vector<8x128xf32>, vector<128x128xf32>, vector<8x128xf32> -> vector<8x128xf32>
    %171 = arith.addf %167, %170 : vector<8x128xf32>
    %172 = math.tanh %171 : vector<8x128xf32>
    %173 = arith.cmpf one, %172, %172 : vector<8x128xf32>
    %174 = arith.extui %173 : vector<8x128xi1> to vector<8x128xi32>
    %175 = arith.sitofp %174 : vector<8x128xi32> to vector<8x128xf32>
    %176 = arith.addf %164, %175 : vector<8x128xf32>
    %c4_i32_131 = arith.constant 4 : i32
    %177 = arith.index_cast %c4_i32_131 : i32 to index
    %c0_132 = arith.constant 0 : index
    %c0_133 = arith.constant 0 : index
    %178 = vector.load %arg7[%177, %c0_132, %c0_133] : memref<8x8x128xf32, #tpu.memory_space<vmem>>, vector<1x8x128xf32>
    %179 = vector.shape_cast %178 : vector<1x8x128xf32> to vector<8x128xf32>
    %c3_134 = arith.constant 3 : index
    %c0_135 = arith.constant 0 : index
    %c0_136 = arith.constant 0 : index
    %180 = vector.load %arg2[%c3_134, %c0_135, %c0_136] : memref<4x128x128xf32, #tpu.memory_space<vmem>>, vector<1x128x128xf32>
    %181 = vector.shape_cast %180 : vector<1x128x128xf32> to vector<128x128xf32>
    %cst_137 = arith.constant dense<0.000000e+00> : vector<8x128xf32>
    %182 = tpu.matmul %172, %181, %cst_137 {dimension_numbers = #tpu.dot_dimension_numbers<[1], [0], [0], [1], [0, 0, 1, 1], [], []>} : vector<8x128xf32>, vector<128x128xf32>, vector<8x128xf32> -> vector<8x128xf32>
    %183 = arith.addf %179, %182 : vector<8x128xf32>
    %184 = math.tanh %183 : vector<8x128xf32>
    %185 = arith.cmpf one, %184, %184 : vector<8x128xf32>
    %186 = arith.extui %185 : vector<8x128xi1> to vector<8x128xi32>
    %187 = arith.sitofp %186 : vector<8x128xi32> to vector<8x128xf32>
    %188 = arith.addf %176, %187 : vector<8x128xf32>
    %c5_i32_138 = arith.constant 5 : i32
    %189 = arith.index_cast %c5_i32_138 : i32 to index
    %c0_139 = arith.constant 0 : index
    %c0_140 = arith.constant 0 : index
    %190 = vector.load %arg7[%189, %c0_139, %c0_140] : memref<8x8x128xf32, #tpu.memory_space<vmem>>, vector<1x8x128xf32>
    %191 = vector.shape_cast %190 : vector<1x8x128xf32> to vector<8x128xf32>
    %c3_141 = arith.constant 3 : index
    %c0_142 = arith.constant 0 : index
    %c0_143 = arith.constant 0 : index
    %192 = vector.load %arg2[%c3_141, %c0_142, %c0_143] : memref<4x128x128xf32, #tpu.memory_space<vmem>>, vector<1x128x128xf32>
    %193 = vector.shape_cast %192 : vector<1x128x128xf32> to vector<128x128xf32>
    %cst_144 = arith.constant dense<0.000000e+00> : vector<8x128xf32>
    %194 = tpu.matmul %184, %193, %cst_144 {dimension_numbers = #tpu.dot_dimension_numbers<[1], [0], [0], [1], [0, 0, 1, 1], [], []>} : vector<8x128xf32>, vector<128x128xf32>, vector<8x128xf32> -> vector<8x128xf32>
    %195 = arith.addf %191, %194 : vector<8x128xf32>
    %196 = math.tanh %195 : vector<8x128xf32>
    %197 = arith.cmpf one, %196, %196 : vector<8x128xf32>
    %198 = arith.extui %197 : vector<8x128xi1> to vector<8x128xi32>
    %199 = arith.sitofp %198 : vector<8x128xi32> to vector<8x128xf32>
    %200 = arith.addf %188, %199 : vector<8x128xf32>
    %c6_i32_145 = arith.constant 6 : i32
    %201 = arith.index_cast %c6_i32_145 : i32 to index
    %c0_146 = arith.constant 0 : index
    %c0_147 = arith.constant 0 : index
    %202 = vector.load %arg7[%201, %c0_146, %c0_147] : memref<8x8x128xf32, #tpu.memory_space<vmem>>, vector<1x8x128xf32>
    %203 = vector.shape_cast %202 : vector<1x8x128xf32> to vector<8x128xf32>
    %c3_148 = arith.constant 3 : index
    %c0_149 = arith.constant 0 : index
    %c0_150 = arith.constant 0 : index
    %204 = vector.load %arg2[%c3_148, %c0_149, %c0_150] : memref<4x128x128xf32, #tpu.memory_space<vmem>>, vector<1x128x128xf32>
    %205 = vector.shape_cast %204 : vector<1x128x128xf32> to vector<128x128xf32>
    %cst_151 = arith.constant dense<0.000000e+00> : vector<8x128xf32>
    %206 = tpu.matmul %196, %205, %cst_151 {dimension_numbers = #tpu.dot_dimension_numbers<[1], [0], [0], [1], [0, 0, 1, 1], [], []>} : vector<8x128xf32>, vector<128x128xf32>, vector<8x128xf32> -> vector<8x128xf32>
    %207 = arith.addf %203, %206 : vector<8x128xf32>
    %208 = math.tanh %207 : vector<8x128xf32>
    %209 = arith.cmpf one, %208, %208 : vector<8x128xf32>
    %210 = arith.extui %209 : vector<8x128xi1> to vector<8x128xi32>
    %211 = arith.sitofp %210 : vector<8x128xi32> to vector<8x128xf32>
    %212 = arith.addf %200, %211 : vector<8x128xf32>
    %c7_i32_152 = arith.constant 7 : i32
    %213 = arith.index_cast %c7_i32_152 : i32 to index
    %c0_153 = arith.constant 0 : index
    %c0_154 = arith.constant 0 : index
    %214 = vector.load %arg7[%213, %c0_153, %c0_154] : memref<8x8x128xf32, #tpu.memory_space<vmem>>, vector<1x8x128xf32>
    %215 = vector.shape_cast %214 : vector<1x8x128xf32> to vector<8x128xf32>
    %c3_155 = arith.constant 3 : index
    %c0_156 = arith.constant 0 : index
    %c0_157 = arith.constant 0 : index
    %216 = vector.load %arg2[%c3_155, %c0_156, %c0_157] : memref<4x128x128xf32, #tpu.memory_space<vmem>>, vector<1x128x128xf32>
    %217 = vector.shape_cast %216 : vector<1x128x128xf32> to vector<128x128xf32>
    %cst_158 = arith.constant dense<0.000000e+00> : vector<8x128xf32>
    %218 = tpu.matmul %208, %217, %cst_158 {dimension_numbers = #tpu.dot_dimension_numbers<[1], [0], [0], [1], [0, 0, 1, 1], [], []>} : vector<8x128xf32>, vector<128x128xf32>, vector<8x128xf32> -> vector<8x128xf32>
    %219 = arith.addf %215, %218 : vector<8x128xf32>
    %220 = math.tanh %219 : vector<8x128xf32>
    %221 = arith.cmpf one, %220, %220 : vector<8x128xf32>
    %222 = arith.extui %221 : vector<8x128xi1> to vector<8x128xi32>
    %223 = arith.sitofp %222 : vector<8x128xi32> to vector<8x128xf32>
    %224 = arith.addf %212, %223 : vector<8x128xf32>
    %c8_i32_159 = arith.constant 8 : i32
    %cst_160 = arith.constant dense<0.000000e+00> : vector<128xf32>
    %225 = vector.multi_reduction <add>, %224, %cst_160 [0] : vector<8x128xf32> to vector<128xf32>
    %226 = vector.shape_cast %225 : vector<128xf32> to vector<1x128xf32>
    %c0_161 = arith.constant 0 : index
    %c0_162 = arith.constant 0 : index
    %227 = vector.load %arg6[%c0_161, %c0_162] : memref<1x128xf32, #tpu.memory_space<vmem>>, vector<1x128xf32>
    tpu.vector_store %arg6[%c0_161, %c0_162], %226 {strides = array<i32>} : memref<1x128xf32, #tpu.memory_space<vmem>>, vector<1x128xf32>,
    %c128 = arith.constant 128 : index
    %c0_163 = arith.constant 0 : index
    %228 = vector.load %arg3[%c128, %c0_163] : memref<512x128xf32, #tpu.memory_space<vmem>>, vector<128x128xf32>
    %c256 = arith.constant 256 : index
    %c0_164 = arith.constant 0 : index
    %229 = vector.load %arg3[%c256, %c0_164] : memref<512x128xf32, #tpu.memory_space<vmem>>, vector<128x128xf32>
    %c384 = arith.constant 384 : index
    %c0_165 = arith.constant 0 : index
    %230 = vector.load %arg3[%c384, %c0_165] : memref<512x128xf32, #tpu.memory_space<vmem>>, vector<128x128xf32>
    %cst_166 = arith.constant dense<0.000000e+00> : vector<8x128xf32>
    %231 = tpu.matmul %220, %228, %cst_166 {dimension_numbers = #tpu.dot_dimension_numbers<[1], [0], [0], [1], [0, 0, 1, 1], [], []>} : vector<8x128xf32>, vector<128x128xf32>, vector<8x128xf32> -> vector<8x128xf32>
    %232 = arith.addf %5, %231 : vector<8x128xf32>
    %cst_167 = arith.constant 0.000000e+00 : f32
    %233 = vector.broadcast %cst_167 : f32 to vector<8x128xf32>
    %234 = arith.maximumf %232, %233 : vector<8x128xf32>
    %cst_168 = arith.constant dense<0.000000e+00> : vector<8x128xf32>
    %235 = tpu.matmul %234, %229, %cst_168 {dimension_numbers = #tpu.dot_dimension_numbers<[1], [0], [0], [1], [0, 0, 1, 1], [], []>} : vector<8x128xf32>, vector<128x128xf32>, vector<8x128xf32> -> vector<8x128xf32>
    %c3_169 = arith.constant 3 : index
    %c0_170 = arith.constant 0 : index
    %236 = vector.load %arg4[%c3_169, %c0_170] : memref<5x128xf32, #tpu.memory_space<vmem>>, vector<1x128xf32>
    %237 = vector.broadcast %236 : vector<1x128xf32> to vector<8x128xf32>
    %238 = arith.addf %235, %237 : vector<8x128xf32>
    %cst_171 = arith.constant 0.000000e+00 : f32
    %239 = vector.broadcast %cst_171 : f32 to vector<8x128xf32>
    %240 = arith.maximumf %238, %239 : vector<8x128xf32>
    %cst_172 = arith.constant dense<0.000000e+00> : vector<8x128xf32>
    %241 = tpu.matmul %240, %230, %cst_172 {dimension_numbers = #tpu.dot_dimension_numbers<[1], [0], [0], [1], [0, 0, 1, 1], [], []>} : vector<8x128xf32>, vector<128x128xf32>, vector<8x128xf32> -> vector<8x128xf32>
    %c4 = arith.constant 4 : index
    %c0_173 = arith.constant 0 : index
    %242 = vector.load %arg4[%c4, %c0_173] : memref<5x128xf32, #tpu.memory_space<vmem>>, vector<1x128xf32>
    %243 = vector.broadcast %242 : vector<1x128xf32> to vector<8x128xf32>
    %244 = arith.addf %241, %243 : vector<8x128xf32>
    %c0_174 = arith.constant 0 : index
    %c0_175 = arith.constant 0 : index
    %245 = vector.load %arg5[%c0_174, %c0_175] : memref<8x128xf32, #tpu.memory_space<vmem>>, vector<8x128xf32>
    tpu.vector_store %arg5[%c0_174, %c0_175], %244 {strides = array<i32>} : memref<8x128xf32, #tpu.memory_space<vmem>>, vector<8x128xf32>,
    return
  }
}

</mosaic_0001>

<llo_original>
// kernel: _forward_impl.1
$region0: #{_forward_impl.1}
  #allocation0 [shape = 'u32[]', space=smem, size = 0x4, offset = 0x4, fixed_abs, tag = 'smem constant byte address 0x4 - core index']
  #allocation1 [shape = 'u32[72,128]{1,0:T(1,128)}', space=vmem, size = 0x9000, scoped, tag = 'internal scratch']
  #allocation2 [shape = 'f32[8,8,128]{2,1,0:T(8,128)}', space=vmem, size = 0x8000, scoped, tag = 'scratch operand']
  %s0 = inlined_call_operand.vmem [shape: f32[8,8,6], index: 0, kind: input, shape index: {}]
  %s1 = inlined_call_operand.vmem [shape: f32[8,128], index: 1, kind: input, shape index: {}]
  %s2 = inlined_call_operand.hbm [shape: f32[4,128,128], index: 2, kind: input, shape index: {}]
  %s3 = inlined_call_operand.hbm [shape: f32[512,128], index: 3, kind: input, shape index: {}]
  %s4 = inlined_call_operand.vmem [shape: f32[5,128], index: 4, kind: input, shape index: {}]
  %s5 = inlined_call_operand.vmem [shape: f32[8,128], index: 5, kind: output, shape index: {0}]
  %s6 = inlined_call_operand.vmem [shape: f32[1,128], index: 6, kind: output, shape index: {1}]
  %7 = xla_tuple %s5, %s6
  %s8 = sld [smem:[#allocation0]]
  $region46: #{_forward_impl.1} parent=0
    _
  %s10 = ssub.s32 1, %s8
  %s11 = scalar_select 0, %s10, %s8
  $region1: #{_forward_impl.1} parent=0
    #allocation3 [shape = 'u8[262144]{0}', space=vmem, size = 0x40000, scoped, tag = 'input window, operand 2, single buffered']
    #allocation4 [shape = 's32[1]{0}', space=sflag, size = 0x4, scoped, tag = 'scoped memory for _forward_impl.1']
    #allocation5 [shape = 'u8[262144]{0}', space=vmem, size = 0x40000, scoped, tag = 'input window, operand 3, single buffered']
    #allocation6 [shape = 's32[1]{0}', space=sflag, size = 0x4, scoped, tag = 'scoped memory for _forward_impl.1']
    %12 = vsyncpa [#allocation4], 0
    %13 = vsyncpa [#allocation6], 0
    // Predicated region
    $region2: #{_forward_impl.1} parent=1 // pred_check
      _
    $region3: #{_forward_impl.1} parent=1 // pred_check_branch
      %15 = sbr.rel (0) target = $region5
    $region4: #{_forward_impl.1} parent=1 // pred_region
      _
    $region5: #{_forward_impl.1} parent=1 // pred_fallthru
      _
    // Predicated region
    $region6: #{_forward_impl.1} parent=1 // pred_check
      _
    $region7: #{_forward_impl.1} parent=1 // pred_check_branch
      %17 = sbr.rel (0) target = $region9
    $region8: #{_forward_impl.1} parent=1 // pred_region
      _
    $region9: #{_forward_impl.1} parent=1 // pred_fallthru
      _
    // Predicated region
    $region10: #{_forward_impl.1} parent=1 // pred_check
      _
    $region11: #{_forward_impl.1} parent=1 // pred_check_branch
      %19 = sbr.rel (0) target = $region13
    $region12: #{_forward_impl.1} parent=1 // pred_region
      %21 = vsyncadd [#allocation4], 0
      %s22 = sshll.u32 %s2, 4
      %s23 = int_to_ptr.hbm [resolvable:$true] %s22
      %s24 = sshll.u32 [#allocation3], 4
      %s25 = int_to_ptr.vmem [resolvable:$true] %s24
      %30 = dma.hbm_to_vmem [thread:$0]  %s23, 8192, %s25, [#allocation4], 128, 128, 8
    $region13: #{_forward_impl.1} parent=1 // pred_fallthru
      _
    // Predicated region
    $region14: #{_forward_impl.1} parent=1 // pred_check
      _
    $region15: #{_forward_impl.1} parent=1 // pred_check_branch
      %32 = sbr.rel (0) target = $region17
    $region16: #{_forward_impl.1} parent=1 // pred_region
      %34 = vsyncadd [#allocation6], 0
      %s35 = sshll.u32 %s3, 4
      %s36 = int_to_ptr.hbm [resolvable:$true] %s35
      %s37 = sshll.u32 [#allocation5], 4
      %s38 = int_to_ptr.vmem [resolvable:$true] %s37
      %43 = dma.hbm_to_vmem [thread:$0]  %s36, 8192, %s38, [#allocation6], 128, 128, 8
    $region17: #{_forward_impl.1} parent=1 // pred_fallthru
      _
    // Predicated region
    $region18: #{_forward_impl.1} parent=1 // pred_check
      _
    $region19: #{_forward_impl.1} parent=1 // pred_check_branch
      %45 = sbr.rel (0) target = $region21
    $region20: #{_forward_impl.1} parent=1 // pred_region
      _
    $region21: #{_forward_impl.1} parent=1 // pred_fallthru
      _
    // Predicated region
    $region22: #{_forward_impl.1} parent=1 // pred_check
      _
    $region23: #{_forward_impl.1} parent=1 // pred_check_branch
      %47 = sbr.rel (0) target = $region25
    $region24: #{_forward_impl.1} parent=1 // pred_region
      %49 = dma.done [#allocation4], 8192
    $region25: #{_forward_impl.1} parent=1 // pred_fallthru
      _
    // Predicated region
    $region26: #{_forward_impl.1} parent=1 // pred_check
      _
    $region27: #{_forward_impl.1} parent=1 // pred_check_branch
      %51 = sbr.rel (0) target = $region29
    $region28: #{_forward_impl.1} parent=1 // pred_region
      %53 = dma.done [#allocation6], 8192
    $region29: #{_forward_impl.1} parent=1 // pred_fallthru
      _
    %v54 = vld [vmem:[%s1] sm:$0xff]
    %v55 = vld [vmem:[#allocation5] sm:$0xff]
    %v56 = vld [vmem:[#allocation5 + $0x8] sm:$0xff]
    %v57 = vld [vmem:[#allocation5 + $0x10] sm:$0xff]
    %v58 = vld [vmem:[#allocation5 + $0x18] sm:$0xff]
    %v59 = vld [vmem:[#allocation5 + $0x20] sm:$0xff]
    %v60 = vld [vmem:[#allocation5 + $0x28] sm:$0xff]
    %v61 = vld [vmem:[#allocation5 + $0x30] sm:$0xff]
    %v62 = vld [vmem:[#allocation5 + $0x38] sm:$0xff]
    %v63 = vld [vmem:[#allocation5 + $0x40] sm:$0xff]
    %v64 = vld [vmem:[#allocation5 + $0x48] sm:$0xff]
    %v65 = vld [vmem:[#allocation5 + $0x50] sm:$0xff]
    %v66 = vld [vmem:[#allocation5 + $0x58] sm:$0xff]
    %v67 = vld [vmem:[#allocation5 + $0x60] sm:$0xff]
    %v68 = vld [vmem:[#allocation5 + $0x68] sm:$0xff]
    %v69 = vld [vmem:[#allocation5 + $0x70] sm:$0xff]
    %v70 = vld [vmem:[#allocation5 + $0x78] sm:$0xff]
    %v71 = vld [vmem:[%s4 + $0x2] sm:$0x1]
    %v72 = vperm.slane %v71, 0
    %73 = vmatpush.msra.mxu0 %v70
    %74 = vmatpush.msra.mxu0 %v69
    %75 = vmatpush.msra.mxu0 %v68
    %76 = vmatpush.msra.mxu0 %v67
    %77 = vmatpush.msra.mxu0 %v66
    %78 = vmatpush.msra.mxu0 %v65
    %79 = vmatpush.msra.mxu0 %v64
    %80 = vmatpush.msra.mxu0 %v63
    %81 = vmatpush.msra.mxu0 %v62
    %82 = vmatpush.msra.mxu0 %v61
    %83 = vmatpush.msra.mxu0 %v60
    %84 = vmatpush.msra.mxu0 %v59
    %85 = vmatpush.msra.mxu0 %v58
    %86 = vmatpush.msra.mxu0 %v57
    %87 = vmatpush.msra.mxu0 %v56
    %88 = vmatpush.msra.mxu0 %v55
    %89 = vmatmul.f32.gmra.mxu0 %v54
    %v90 = vpop.f32.mrf.mxu0
    %v91 = vadd.f32 %v72, %v90
    %92 = vdwg.mxu0
    %93 = vst [vmem:[#allocation2] sm:$0xff] 0.0
    %94 = vst [vmem:[#allocation2 + $0x8] sm:$0xff] 0.0
    %95 = vst [vmem:[#allocation2 + $0x10] sm:$0xff] 0.0
    %96 = vst [vmem:[#allocation2 + $0x18] sm:$0xff] 0.0
    %97 = vst [vmem:[#allocation2 + $0x20] sm:$0xff] 0.0
    %98 = vst [vmem:[#allocation2 + $0x28] sm:$0xff] 0.0
    %99 = vst [vmem:[#allocation2 + $0x30] sm:$0xff] 0.0
    %100 = vst [vmem:[#allocation2 + $0x38] sm:$0xff] 0.0
    %v101 = vld [vmem:[%s0] sm:$0xff]
    %v102 = vld [vmem:[%s0 + $0x8] sm:$0xff]
    %v103 = vld [vmem:[%s0 + $0x10] sm:$0xff]
    %v104 = vld [vmem:[%s0 + $0x18] sm:$0xff]
    %v105 = vld [vmem:[%s0 + $0x20] sm:$0xff]
    %v106 = vld [vmem:[%s0 + $0x28] sm:$0xff]
    %v107 = vld [vmem:[%s0 + $0x30] sm:$0xff]
    %v108 = vld [vmem:[%s0 + $0x38] sm:$0xff]
    %vm109 = vcmask 48128
    %110 = vst.msk [vmem:[#allocation2] sm:$0xff] %vm109, %v101
    %111 = vst.msk [vmem:[#allocation2 + $0x8] sm:$0xff] %vm109, %v102
    %112 = vst.msk [vmem:[#allocation2 + $0x10] sm:$0xff] %vm109, %v103
    %113 = vst.msk [vmem:[#allocation2 + $0x18] sm:$0xff] %vm109, %v104
    %114 = vst.msk [vmem:[#allocation2 + $0x20] sm:$0xff] %vm109, %v105
    %115 = vst.msk [vmem:[#allocation2 + $0x28] sm:$0xff] %vm109, %v106
    %116 = vst.msk [vmem:[#allocation2 + $0x30] sm:$0xff] %vm109, %v107
    %117 = vst.msk [vmem:[#allocation2 + $0x38] sm:$0xff] %vm109, %v108
    %v118 = vld [vmem:[#allocation3] sm:$0xff]
    %v119 = vld [vmem:[#allocation3 + $0x8] sm:$0xff]
    %v120 = vld [vmem:[#allocation3 + $0x10] sm:$0xff]
    %v121 = vld [vmem:[#allocation3 + $0x18] sm:$0xff]
    %v122 = vld [vmem:[#allocation3 + $0x20] sm:$0xff]
    %v123 = vld [vmem:[#allocation3 + $0x28] sm:$0xff]
    %v124 = vld [vmem:[#allocation3 + $0x30] sm:$0xff]
    %v125 = vld [vmem:[#allocation3 + $0x38] sm:$0xff]
    %v126 = vld [vmem:[#allocation3 + $0x40] sm:$0xff]
    %v127 = vld [vmem:[#allocation3 + $0x48] sm:$0xff]
    %v128 = vld [vmem:[#allocation3 + $0x50] sm:$0xff]
    %v129 = vld [vmem:[#allocation3 + $0x58] sm:$0xff]
    %v130 = vld [vmem:[#allocation3 + $0x60] sm:$0xff]
    %v131 = vld [vmem:[#allocation3 + $0x68] sm:$0xff]
    %v132 = vld [vmem:[#allocation3 + $0x70] sm:$0xff]
    %v133 = vld [vmem:[#allocation3 + $0x78] sm:$0xff]
    %v134 = vld [vmem:[#allocation2] sm:$0xff]
    %v135 = vld [vmem:[#allocation2 + $0x8] sm:$0xff]
    %v136 = vld [vmem:[#allocation2 + $0x10] sm:$0xff]
    %v137 = vld [vmem:[#allocation2 + $0x18] sm:$0xff]
    %v138 = vld [vmem:[#allocation2 + $0x20] sm:$0xff]
    %v139 = vld [vmem:[#allocation2 + $0x28] sm:$0xff]
    %v140 = vld [vmem:[#allocation2 + $0x30] sm:$0xff]
    %v141 = vld [vmem:[#allocation2 + $0x38] sm:$0xff]
    %v142 = vld [vmem:[%s4] sm:$0x1]
    %v143 = vperm.slane %v142, 0
    %144 = vmatpush.msra.mxu0 %v133
    %145 = vmatpush.msra.mxu0 %v132
    %146 = vmatpush.msra.mxu0 %v131
    %147 = vmatpush.msra.mxu0 %v130
    %148 = vmatpush.msra.mxu0 %v129
    %149 = vmatpush.msra.mxu0 %v128
    %150 = vmatpush.msra.mxu0 %v127
    %151 = vmatpush.msra.mxu0 %v126
    %152 = vmatpush.msra.mxu0 %v125
    %153 = vmatpush.msra.mxu0 %v124
    %154 = vmatpush.msra.mxu0 %v123
    %155 = vmatpush.msra.mxu0 %v122
    %156 = vmatpush.msra.mxu0 %v121
    %157 = vmatpush.msra.mxu0 %v120
    %158 = vmatpush.msra.mxu0 %v119
    %159 = vmatpush.msra.mxu0 %v118
    %160 = vmatmul.f32.gmra.mxu0 %v134
    %v161 = vpop.f32.mrf.mxu0
    %v162 = vadd.f32 %v143, %v161
    %163 = vmatmul.f32.gmra.mxu0 %v135
    %v164 = vpop.f32.mrf.mxu0
    %v165 = vadd.f32 %v143, %v164
    %166 = vmatmul.f32.gmra.mxu0 %v136
    %v167 = vpop.f32.mrf.mxu0
    %v168 = vadd.f32 %v143, %v167
    %169 = vmatmul.f32.gmra.mxu0 %v137
    %v170 = vpop.f32.mrf.mxu0
    %v171 = vadd.f32 %v143, %v170
    %172 = vmatmul.f32.gmra.mxu0 %v138
    %v173 = vpop.f32.mrf.mxu0
    %v174 = vadd.f32 %v143, %v173
    %175 = vmatmul.f32.gmra.mxu0 %v139
    %v176 = vpop.f32.mrf.mxu0
    %v177 = vadd.f32 %v143, %v176
    %178 = vmatmul.f32.gmra.mxu0 %v140
    %v179 = vpop.f32.mrf.mxu0
    %v180 = vadd.f32 %v143, %v179
    %181 = vmatmul.f32.gmra.mxu0 %v141
    %v182 = vpop.f32.mrf.mxu0
    %v183 = vadd.f32 %v143, %v182
    %184 = vdwg.mxu0
    %185 = vst [vmem:[#allocation2] sm:$0xff] %v162
    %186 = vst [vmem:[#allocation2 + $0x8] sm:$0xff] %v165
    %187 = vst [vmem:[#allocation2 + $0x10] sm:$0xff] %v168
    %188 = vst [vmem:[#allocation2 + $0x18] sm:$0xff] %v171
    %189 = vst [vmem:[#allocation2 + $0x20] sm:$0xff] %v174
    %190 = vst [vmem:[#allocation2 + $0x28] sm:$0xff] %v177
    %191 = vst [vmem:[#allocation2 + $0x30] sm:$0xff] %v180
    %192 = vst [vmem:[#allocation2 + $0x38] sm:$0xff] %v183
    %v193 = vld [vmem:[#allocation2] sm:$0xff]
    %s194 = scalar_lea.vmem [#allocation3], 128
    %v195 = vld [vmem:[%s194] sm:$0xff]
    %v196 = vld [vmem:[%s194 + $0x8] sm:$0xff]
    %v197 = vld [vmem:[%s194 + $0x10] sm:$0xff]
    %v198 = vld [vmem:[%s194 + $0x18] sm:$0xff]
    %v199 = vld [vmem:[%s194 + $0x20] sm:$0xff]
    %v200 = vld [vmem:[%s194 + $0x28] sm:$0xff]
    %v201 = vld [vmem:[%s194 + $0x30] sm:$0xff]
    %v202 = vld [vmem:[%s194 + $0x38] sm:$0xff]
    %v203 = vld [vmem:[%s194 + $0x40] sm:$0xff]
    %v204 = vld [vmem:[%s194 + $0x48] sm:$0xff]
    %v205 = vld [vmem:[%s194 + $0x50] sm:$0xff]
    %v206 = vld [vmem:[%s194 + $0x58] sm:$0xff]
    %v207 = vld [vmem:[%s194 + $0x60] sm:$0xff]
    %v208 = vld [vmem:[%s194 + $0x68] sm:$0xff]
    %v209 = vld [vmem:[%s194 + $0x70] sm:$0xff]
    %v210 = vld [vmem:[%s194 + $0x78] sm:$0xff]
    %211 = vmatpush.msra.mxu0 %v210
    %212 = vmatpush.msra.mxu0 %v209
    %213 = vmatpush.msra.mxu0 %v208
    %214 = vmatpush.msra.mxu0 %v207
    %215 = vmatpush.msra.mxu0 %v206
    %216 = vmatpush.msra.mxu0 %v205
    %217 = vmatpush.msra.mxu0 %v204
    %218 = vmatpush.msra.mxu0 %v203
    %219 = vmatpush.msra.mxu0 %v202
    %220 = vmatpush.msra.mxu0 %v201
    %221 = vmatpush.msra.mxu0 %v200
    %222 = vmatpush.msra.mxu0 %v199
    %223 = vmatpush.msra.mxu0 %v198
    %224 = vmatpush.msra.mxu0 %v197
    %225 = vmatpush.msra.mxu0 %v196
    %226 = vmatpush.msra.mxu0 %v195
    %227 = vmatmul.f32.gmra.mxu0 0.0
    %v228 = vpop.f32.mrf.mxu0
    %v229 = vadd.f32 0.0, %v228
    %230 = vdwg.mxu0
    %v231 = vadd.f32 %v193, %v229
    %v232 = vtanh.pop %v231
    %233 = vst [vmem:[#allocation2] sm:$0xff] %v232
    %s234 = scalar_lea.vmem [#allocation2], 8
    %v235 = vld [vmem:[%s234] sm:$0xff]
    %v236 = vld [vmem:[%s194] sm:$0xff]
    %v237 = vld [vmem:[%s194 + $0x8] sm:$0xff]
    %v238 = vld [vmem:[%s194 + $0x10] sm:$0xff]
    %v239 = vld [vmem:[%s194 + $0x18] sm:$0xff]
    %v240 = vld [vmem:[%s194 + $0x20] sm:$0xff]
    %v241 = vld [vmem:[%s194 + $0x28] sm:$0xff]
    %v242 = vld [vmem:[%s194 + $0x30] sm:$0xff]
    %v243 = vld [vmem:[%s194 + $0x38] sm:$0xff]
    %v244 = vld [vmem:[%s194 + $0x40] sm:$0xff]
    %v245 = vld [vmem:[%s194 + $0x48] sm:$0xff]
    %v246 = vld [vmem:[%s194 + $0x50] sm:$0xff]
    %v247 = vld [vmem:[%s194 + $0x58] sm:$0xff]
    %v248 = vld [vmem:[%s194 + $0x60] sm:$0xff]
    %v249 = vld [vmem:[%s194 + $0x68] sm:$0xff]
    %v250 = vld [vmem:[%s194 + $0x70] sm:$0xff]
    %v251 = vld [vmem:[%s194 + $0x78] sm:$0xff]
    %252 = vmatpush.msra.mxu0 %v251
    %253 = vmatpush.msra.mxu0 %v250
    %254 = vmatpush.msra.mxu0 %v249
    %255 = vmatpush.msra.mxu0 %v248
    %256 = vmatpush.msra.mxu0 %v247
    %257 = vmatpush.msra.mxu0 %v246
    %258 = vmatpush.msra.mxu0 %v245
    %259 = vmatpush.msra.mxu0 %v244
    %260 = vmatpush.msra.mxu0 %v243
    %261 = vmatpush.msra.mxu0 %v242
    %262 = vmatpush.msra.mxu0 %v241
    %263 = vmatpush.msra.mxu0 %v240
    %264 = vmatpush.msra.mxu0 %v239
    %265 = vmatpush.msra.mxu0 %v238
    %266 = vmatpush.msra.mxu0 %v237
    %267 = vmatpush.msra.mxu0 %v236
    %268 = vmatmul.f32.gmra.mxu0 %v232
    %v269 = vpop.f32.mrf.mxu0
    %v270 = vadd.f32 0.0, %v269
    %271 = vdwg.mxu0
    %v272 = vadd.f32 %v235, %v270
    %v273 = vtanh.pop %v272
    %274 = vst [vmem:[%s234] sm:$0xff] %v273
    %s275 = scalar_lea.vmem [#allocation2], 16
    %v276 = vld [vmem:[%s275] sm:$0xff]
    %v277 = vld [vmem:[%s194] sm:$0xff]
    %v278 = vld [vmem:[%s194 + $0x8] sm:$0xff]
    %v279 = vld [vmem:[%s194 + $0x10] sm:$0xff]
    %v280 = vld [vmem:[%s194 + $0x18] sm:$0xff]
    %v281 = vld [vmem:[%s194 + $0x20] sm:$0xff]
    %v282 = vld [vmem:[%s194 + $0x28] sm:$0xff]
    %v283 = vld [vmem:[%s194 + $0x30] sm:$0xff]
    %v284 = vld [vmem:[%s194 + $0x38] sm:$0xff]
    %v285 = vld [vmem:[%s194 + $0x40] sm:$0xff]
    %v286 = vld [vmem:[%s194 + $0x48] sm:$0xff]
    %v287 = vld [vmem:[%s194 + $0x50] sm:$0xff]
    %v288 = vld [vmem:[%s194 + $0x58] sm:$0xff]
    %v289 = vld [vmem:[%s194 + $0x60] sm:$0xff]
    %v290 = vld [vmem:[%s194 + $0x68] sm:$0xff]
    %v291 = vld [vmem:[%s194 + $0x70] sm:$0xff]
    %v292 = vld [vmem:[%s194 + $0x78] sm:$0xff]
    %293 = vmatpush.msra.mxu0 %v292
    %294 = vmatpush.msra.mxu0 %v291
    %295 = vmatpush.msra.mxu0 %v290
    %296 = vmatpush.msra.mxu0 %v289
    %297 = vmatpush.msra.mxu0 %v288
    %298 = vmatpush.msra.mxu0 %v287
    %299 = vmatpush.msra.mxu0 %v286
    %300 = vmatpush.msra.mxu0 %v285
    %301 = vmatpush.msra.mxu0 %v284
    %302 = vmatpush.msra.mxu0 %v283
    %303 = vmatpush.msra.mxu0 %v282
    %304 = vmatpush.msra.mxu0 %v281
    %305 = vmatpush.msra.mxu0 %v280
    %306 = vmatpush.msra.mxu0 %v279
    %307 = vmatpush.msra.mxu0 %v278
    %308 = vmatpush.msra.mxu0 %v277
    %309 = vmatmul.f32.gmra.mxu0 %v273
    %v310 = vpop.f32.mrf.mxu0
    %v311 = vadd.f32 0.0, %v310
    %312 = vdwg.mxu0
    %v313 = vadd.f32 %v276, %v311
    %v314 = vtanh.pop %v313
    %315 = vst [vmem:[%s275] sm:$0xff] %v314
    %s316 = scalar_lea.vmem [#allocation2], 24
    %v317 = vld [vmem:[%s316] sm:$0xff]
    %v318 = vld [vmem:[%s194] sm:$0xff]
    %v319 = vld [vmem:[%s194 + $0x8] sm:$0xff]
    %v320 = vld [vmem:[%s194 + $0x10] sm:$0xff]
    %v321 = vld [vmem:[%s194 + $0x18] sm:$0xff]
    %v322 = vld [vmem:[%s194 + $0x20] sm:$0xff]
    %v323 = vld [vmem:[%s194 + $0x28] sm:$0xff]
    %v324 = vld [vmem:[%s194 + $0x30] sm:$0xff]
    %v325 = vld [vmem:[%s194 + $0x38] sm:$0xff]
    %v326 = vld [vmem:[%s194 + $0x40] sm:$0xff]
    %v327 = vld [vmem:[%s194 + $0x48] sm:$0xff]
    %v328 = vld [vmem:[%s194 + $0x50] sm:$0xff]
    %v329 = vld [vmem:[%s194 + $0x58] sm:$0xff]
    %v330 = vld [vmem:[%s194 + $0x60] sm:$0xff]
    %v331 = vld [vmem:[%s194 + $0x68] sm:$0xff]
    %v332 = vld [vmem:[%s194 + $0x70] sm:$0xff]
    %v333 = vld [vmem:[%s194 + $0x78] sm:$0xff]
    %334 = vmatpush.msra.mxu0 %v333
    %335 = vmatpush.msra.mxu0 %v332
    %336 = vmatpush.msra.mxu0 %v331
    %337 = vmatpush.msra.mxu0 %v330
    %338 = vmatpush.msra.mxu0 %v329
    %339 = vmatpush.msra.mxu0 %v328
    %340 = vmatpush.msra.mxu0 %v327
    %341 = vmatpush.msra.mxu0 %v326
    %342 = vmatpush.msra.mxu0 %v325
    %343 = vmatpush.msra.mxu0 %v324
    %344 = vmatpush.msra.mxu0 %v323
    %345 = vmatpush.msra.mxu0 %v322
    %346 = vmatpush.msra.mxu0 %v321
    %347 = vmatpush.msra.mxu0 %v320
    %348 = vmatpush.msra.mxu0 %v319
    %349 = vmatpush.msra.mxu0 %v318
    %350 = vmatmul.f32.gmra.mxu0 %v314
    %v351 = vpop.f32.mrf.mxu0
    %v352 = vadd.f32 0.0, %v351
    %353 = vdwg.mxu0
    %v354 = vadd.f32 %v317, %v352
    %v355 = vtanh.pop %v354
    %356 = vst [vmem:[%s316] sm:$0xff] %v355
    %s357 = scalar_lea.vmem [#allocation2], 32
    %v358 = vld [vmem:[%s357] sm:$0xff]
    %v359 = vld [vmem:[%s194] sm:$0xff]
    %v360 = vld [vmem:[%s194 + $0x8] sm:$0xff]
    %v361 = vld [vmem:[%s194 + $0x10] sm:$0xff]
    %v362 = vld [vmem:[%s194 + $0x18] sm:$0xff]
    %v363 = vld [vmem:[%s194 + $0x20] sm:$0xff]
    %v364 = vld [vmem:[%s194 + $0x28] sm:$0xff]
    %v365 = vld [vmem:[%s194 + $0x30] sm:$0xff]
    %v366 = vld [vmem:[%s194 + $0x38] sm:$0xff]
    %v367 = vld [vmem:[%s194 + $0x40] sm:$0xff]
    %v368 = vld [vmem:[%s194 + $0x48] sm:$0xff]
    %v369 = vld [vmem:[%s194 + $0x50] sm:$0xff]
    %v370 = vld [vmem:[%s194 + $0x58] sm:$0xff]
    %v371 = vld [vmem:[%s194 + $0x60] sm:$0xff]
    %v372 = vld [vmem:[%s194 + $0x68] sm:$0xff]
    %v373 = vld [vmem:[%s194 + $0x70] sm:$0xff]
    %v374 = vld [vmem:[%s194 + $0x78] sm:$0xff]
    %375 = vmatpush.msra.mxu0 %v374
    %376 = vmatpush.msra.mxu0 %v373
    %377 = vmatpush.msra.mxu0 %v372
    %378 = vmatpush.msra.mxu0 %v371
    %379 = vmatpush.msra.mxu0 %v370
    %380 = vmatpush.msra.mxu0 %v369
    %381 = vmatpush.msra.mxu0 %v368
    %382 = vmatpush.msra.mxu0 %v367
    %383 = vmatpush.msra.mxu0 %v366
    %384 = vmatpush.msra.mxu0 %v365
    %385 = vmatpush.msra.mxu0 %v364
    %386 = vmatpush.msra.mxu0 %v363
    %387 = vmatpush.msra.mxu0 %v362
    %388 = vmatpush.msra.mxu0 %v361
    %389 = vmatpush.msra.mxu0 %v360
    %390 = vmatpush.msra.mxu0 %v359
    %391 = vmatmul.f32.gmra.mxu0 %v355
    %v392 = vpop.f32.mrf.mxu0
    %v393 = vadd.f32 0.0, %v392
    %394 = vdwg.mxu0
    %v395 = vadd.f32 %v358, %v393
    %v396 = vtanh.pop %v395
    %397 = vst [vmem:[%s357] sm:$0xff] %v396
    %s398 = scalar_lea.vmem [#allocation2], 40
    %v399 = vld [vmem:[%s398] sm:$0xff]
    %v400 = vld [vmem:[%s194] sm:$0xff]
    %v401 = vld [vmem:[%s194 + $0x8] sm:$0xff]
    %v402 = vld [vmem:[%s194 + $0x10] sm:$0xff]
    %v403 = vld [vmem:[%s194 + $0x18] sm:$0xff]
    %v404 = vld [vmem:[%s194 + $0x20] sm:$0xff]
    %v405 = vld [vmem:[%s194 + $0x28] sm:$0xff]
    %v406 = vld [vmem:[%s194 + $0x30] sm:$0xff]
    %v407 = vld [vmem:[%s194 + $0x38] sm:$0xff]
    %v408 = vld [vmem:[%s194 + $0x40] sm:$0xff]
    %v409 = vld [vmem:[%s194 + $0x48] sm:$0xff]
    %v410 = vld [vmem:[%s194 + $0x50] sm:$0xff]
    %v411 = vld [vmem:[%s194 + $0x58] sm:$0xff]
    %v412 = vld [vmem:[%s194 + $0x60] sm:$0xff]
    %v413 = vld [vmem:[%s194 + $0x68] sm:$0xff]
    %v414 = vld [vmem:[%s194 + $0x70] sm:$0xff]
    %v415 = vld [vmem:[%s194 + $0x78] sm:$0xff]
    %416 = vmatpush.msra.mxu0 %v415
    %417 = vmatpush.msra.mxu0 %v414
    %418 = vmatpush.msra.mxu0 %v413
    %419 = vmatpush.msra.mxu0 %v412
    %420 = vmatpush.msra.mxu0 %v411
    %421 = vmatpush.msra.mxu0 %v410
    %422 = vmatpush.msra.mxu0 %v409
    %423 = vmatpush.msra.mxu0 %v408
    %424 = vmatpush.msra.mxu0 %v407
    %425 = vmatpush.msra.mxu0 %v406
    %426 = vmatpush.msra.mxu0 %v405
    %427 = vmatpush.msra.mxu0 %v404
    %428 = vmatpush.msra.mxu0 %v403
    %429 = vmatpush.msra.mxu0 %v402
    %430 = vmatpush.msra.mxu0 %v401
    %431 = vmatpush.msra.mxu0 %v400
    %432 = vmatmul.f32.gmra.mxu0 %v396
    %v433 = vpop.f32.mrf.mxu0
    %v434 = vadd.f32 0.0, %v433
    %435 = vdwg.mxu0
    %v436 = vadd.f32 %v399, %v434
    %v437 = vtanh.pop %v436
    %438 = vst [vmem:[%s398] sm:$0xff] %v437
    %s439 = scalar_lea.vmem [#allocation2], 48
    %v440 = vld [vmem:[%s439] sm:$0xff]
    %v441 = vld [vmem:[%s194] sm:$0xff]
    %v442 = vld [vmem:[%s194 + $0x8] sm:$0xff]
    %v443 = vld [vmem:[%s194 + $0x10] sm:$0xff]
    %v444 = vld [vmem:[%s194 + $0x18] sm:$0xff]
    %v445 = vld [vmem:[%s194 + $0x20] sm:$0xff]
    %v446 = vld [vmem:[%s194 + $0x28] sm:$0xff]
    %v447 = vld [vmem:[%s194 + $0x30] sm:$0xff]
    %v448 = vld [vmem:[%s194 + $0x38] sm:$0xff]
    %v449 = vld [vmem:[%s194 + $0x40] sm:$0xff]
    %v450 = vld [vmem:[%s194 + $0x48] sm:$0xff]
    %v451 = vld [vmem:[%s194 + $0x50] sm:$0xff]
    %v452 = vld [vmem:[%s194 + $0x58] sm:$0xff]
    %v453 = vld [vmem:[%s194 + $0x60] sm:$0xff]
    %v454 = vld [vmem:[%s194 + $0x68] sm:$0xff]
    %v455 = vld [vmem:[%s194 + $0x70] sm:$0xff]
    %v456 = vld [vmem:[%s194 + $0x78] sm:$0xff]
    %457 = vmatpush.msra.mxu0 %v456
    %458 = vmatpush.msra.mxu0 %v455
    %459 = vmatpush.msra.mxu0 %v454
    %460 = vmatpush.msra.mxu0 %v453
    %461 = vmatpush.msra.mxu0 %v452
    %462 = vmatpush.msra.mxu0 %v451
    %463 = vmatpush.msra.mxu0 %v450
    %464 = vmatpush.msra.mxu0 %v449
    %465 = vmatpush.msra.mxu0 %v448
    %466 = vmatpush.msra.mxu0 %v447
    %467 = vmatpush.msra.mxu0 %v446
    %468 = vmatpush.msra.mxu0 %v445
    %469 = vmatpush.msra.mxu0 %v444
    %470 = vmatpush.msra.mxu0 %v443
    %471 = vmatpush.msra.mxu0 %v442
    %472 = vmatpush.msra.mxu0 %v441
    %473 = vmatmul.f32.gmra.mxu0 %v437
    %v474 = vpop.f32.mrf.mxu0
    %v475 = vadd.f32 0.0, %v474
    %476 = vdwg.mxu0
    %v477 = vadd.f32 %v440, %v475
    %v478 = vtanh.pop %v477
    %479 = vst [vmem:[%s439] sm:$0xff] %v478
    %s480 = scalar_lea.vmem [#allocation2], 56
    %v481 = vld [vmem:[%s480] sm:$0xff]
    %v482 = vld [vmem:[%s194] sm:$0xff]
    %v483 = vld [vmem:[%s194 + $0x8] sm:$0xff]
    %v484 = vld [vmem:[%s194 + $0x10] sm:$0xff]
    %v485 = vld [vmem:[%s194 + $0x18] sm:$0xff]
    %v486 = vld [vmem:[%s194 + $0x20] sm:$0xff]
    %v487 = vld [vmem:[%s194 + $0x28] sm:$0xff]
    %v488 = vld [vmem:[%s194 + $0x30] sm:$0xff]
    %v489 = vld [vmem:[%s194 + $0x38] sm:$0xff]
    %v490 = vld [vmem:[%s194 + $0x40] sm:$0xff]
    %v491 = vld [vmem:[%s194 + $0x48] sm:$0xff]
    %v492 = vld [vmem:[%s194 + $0x50] sm:$0xff]
    %v493 = vld [vmem:[%s194 + $0x58] sm:$0xff]
    %v494 = vld [vmem:[%s194 + $0x60] sm:$0xff]
    %v495 = vld [vmem:[%s194 + $0x68] sm:$0xff]
    %v496 = vld [vmem:[%s194 + $0x70] sm:$0xff]
    %v497 = vld [vmem:[%s194 + $0x78] sm:$0xff]
    %498 = vmatpush.msra.mxu0 %v497
    %499 = vmatpush.msra.mxu0 %v496
    %500 = vmatpush.msra.mxu0 %v495
    %501 = vmatpush.msra.mxu0 %v494
    %502 = vmatpush.msra.mxu0 %v493
    %503 = vmatpush.msra.mxu0 %v492
    %504 = vmatpush.msra.mxu0 %v491
    %505 = vmatpush.msra.mxu0 %v490
    %506 = vmatpush.msra.mxu0 %v489
    %507 = vmatpush.msra.mxu0 %v488
    %508 = vmatpush.msra.mxu0 %v487
    %509 = vmatpush.msra.mxu0 %v486
    %510 = vmatpush.msra.mxu0 %v485
    %511 = vmatpush.msra.mxu0 %v484
    %512 = vmatpush.msra.mxu0 %v483
    %513 = vmatpush.msra.mxu0 %v482
    %514 = vmatmul.f32.gmra.mxu0 %v478
    %v515 = vpop.f32.mrf.mxu0
    %v516 = vadd.f32 0.0, %v515
    %517 = vdwg.mxu0
    %v518 = vadd.f32 %v481, %v516
    %v519 = vtanh.pop %v518
    %520 = vst [vmem:[%s480] sm:$0xff] %v519
    %s521 = scalar_lea.vmem [#allocation3], 256
    %v522 = vld [vmem:[%s521] sm:$0xff]
    %v523 = vld [vmem:[%s521 + $0x8] sm:$0xff]
    %v524 = vld [vmem:[%s521 + $0x10] sm:$0xff]
    %v525 = vld [vmem:[%s521 + $0x18] sm:$0xff]
    %v526 = vld [vmem:[%s521 + $0x20] sm:$0xff]
    %v527 = vld [vmem:[%s521 + $0x28] sm:$0xff]
    %v528 = vld [vmem:[%s521 + $0x30] sm:$0xff]
    %v529 = vld [vmem:[%s521 + $0x38] sm:$0xff]
    %v530 = vld [vmem:[%s521 + $0x40] sm:$0xff]
    %v531 = vld [vmem:[%s521 + $0x48] sm:$0xff]
    %v532 = vld [vmem:[%s521 + $0x50] sm:$0xff]
    %v533 = vld [vmem:[%s521 + $0x58] sm:$0xff]
    %v534 = vld [vmem:[%s521 + $0x60] sm:$0xff]
    %v535 = vld [vmem:[%s521 + $0x68] sm:$0xff]
    %v536 = vld [vmem:[%s521 + $0x70] sm:$0xff]
    %v537 = vld [vmem:[%s521 + $0x78] sm:$0xff]
    %v538 = vld [vmem:[#allocation2] sm:$0xff]
    %v539 = vld [vmem:[#allocation2 + $0x8] sm:$0xff]
    %v540 = vld [vmem:[#allocation2 + $0x10] sm:$0xff]
    %v541 = vld [vmem:[#allocation2 + $0x18] sm:$0xff]
    %v542 = vld [vmem:[#allocation2 + $0x20] sm:$0xff]
    %v543 = vld [vmem:[#allocation2 + $0x28] sm:$0xff]
    %v544 = vld [vmem:[#allocation2 + $0x30] sm:$0xff]
    %v545 = vld [vmem:[#allocation2 + $0x38] sm:$0xff]
    %v546 = vld [vmem:[%s4 + $0x1] sm:$0x1]
    %v547 = vperm.slane %v546, 0
    %548 = vmatpush.msra.mxu0 %v537
    %549 = vmatpush.msra.mxu0 %v536
    %550 = vmatpush.msra.mxu0 %v535
    %551 = vmatpush.msra.mxu0 %v534
    %552 = vmatpush.msra.mxu0 %v533
    %553 = vmatpush.msra.mxu0 %v532
    %554 = vmatpush.msra.mxu0 %v531
    %555 = vmatpush.msra.mxu0 %v530
    %556 = vmatpush.msra.mxu0 %v529
    %557 = vmatpush.msra.mxu0 %v528
    %558 = vmatpush.msra.mxu0 %v527
    %559 = vmatpush.msra.mxu0 %v526
    %560 = vmatpush.msra.mxu0 %v525
    %561 = vmatpush.msra.mxu0 %v524
    %562 = vmatpush.msra.mxu0 %v523
    %563 = vmatpush.msra.mxu0 %v522
    %564 = vmatmul.f32.gmra.mxu0 %v538
    %v565 = vpop.f32.mrf.mxu0
    %v566 = vadd.f32 %v547, %v565
    %567 = vmatmul.f32.gmra.mxu0 %v539
    %v568 = vpop.f32.mrf.mxu0
    %v569 = vadd.f32 %v547, %v568
    %570 = vmatmul.f32.gmra.mxu0 %v540
    %v571 = vpop.f32.mrf.mxu0
    %v572 = vadd.f32 %v547, %v571
    %573 = vmatmul.f32.gmra.mxu0 %v541
    %v574 = vpop.f32.mrf.mxu0
    %v575 = vadd.f32 %v547, %v574
    %576 = vmatmul.f32.gmra.mxu0 %v542
    %v577 = vpop.f32.mrf.mxu0
    %v578 = vadd.f32 %v547, %v577
    %579 = vmatmul.f32.gmra.mxu0 %v543
    %v580 = vpop.f32.mrf.mxu0
    %v581 = vadd.f32 %v547, %v580
    %582 = vmatmul.f32.gmra.mxu0 %v544
    %v583 = vpop.f32.mrf.mxu0
    %v584 = vadd.f32 %v547, %v583
    %585 = vmatmul.f32.gmra.mxu0 %v545
    %v586 = vpop.f32.mrf.mxu0
    %v587 = vadd.f32 %v547, %v586
    %588 = vdwg.mxu0
    %589 = vst [vmem:[#allocation2] sm:$0xff] %v566
    %590 = vst [vmem:[#allocation2 + $0x8] sm:$0xff] %v569
    %591 = vst [vmem:[#allocation2 + $0x10] sm:$0xff] %v572
    %592 = vst [vmem:[#allocation2 + $0x18] sm:$0xff] %v575
    %593 = vst [vmem:[#allocation2 + $0x20] sm:$0xff] %v578
    %594 = vst [vmem:[#allocation2 + $0x28] sm:$0xff] %v581
    %595 = vst [vmem:[#allocation2 + $0x30] sm:$0xff] %v584
    %596 = vst [vmem:[#allocation2 + $0x38] sm:$0xff] %v587
    %v597 = vld [vmem:[#allocation2] sm:$0xff]
    %s598 = scalar_lea.vmem [#allocation3], 384
    %v599 = vld [vmem:[%s598] sm:$0xff]
    %v600 = vld [vmem:[%s598 + $0x8] sm:$0xff]
    %v601 = vld [vmem:[%s598 + $0x10] sm:$0xff]
    %v602 = vld [vmem:[%s598 + $0x18] sm:$0xff]
    %v603 = vld [vmem:[%s598 + $0x20] sm:$0xff]
    %v604 = vld [vmem:[%s598 + $0x28] sm:$0xff]
    %v605 = vld [vmem:[%s598 + $0x30] sm:$0xff]
    %v606 = vld [vmem:[%s598 + $0x38] sm:$0xff]
    %v607 = vld [vmem:[%s598 + $0x40] sm:$0xff]
    %v608 = vld [vmem:[%s598 + $0x48] sm:$0xff]
    %v609 = vld [vmem:[%s598 + $0x50] sm:$0xff]
    %v610 = vld [vmem:[%s598 + $0x58] sm:$0xff]
    %v611 = vld [vmem:[%s598 + $0x60] sm:$0xff]
    %v612 = vld [vmem:[%s598 + $0x68] sm:$0xff]
    %v613 = vld [vmem:[%s598 + $0x70] sm:$0xff]
    %v614 = vld [vmem:[%s598 + $0x78] sm:$0xff]
    %615 = vmatpush.msra.mxu0 %v614
    %616 = vmatpush.msra.mxu0 %v613
    %617 = vmatpush.msra.mxu0 %v612
    %618 = vmatpush.msra.mxu0 %v611
    %619 = vmatpush.msra.mxu0 %v610
    %620 = vmatpush.msra.mxu0 %v609
    %621 = vmatpush.msra.mxu0 %v608
    %622 = vmatpush.msra.mxu0 %v607
    %623 = vmatpush.msra.mxu0 %v606
    %624 = vmatpush.msra.mxu0 %v605
    %625 = vmatpush.msra.mxu0 %v604
    %626 = vmatpush.msra.mxu0 %v603
    %627 = vmatpush.msra.mxu0 %v602
    %628 = vmatpush.msra.mxu0 %v601
    %629 = vmatpush.msra.mxu0 %v600
    %630 = vmatpush.msra.mxu0 %v599
    %631 = vmatmul.f32.gmra.mxu0 0.0
    %v632 = vpop.f32.mrf.mxu0
    %v633 = vadd.f32 0.0, %v632
    %634 = vdwg.mxu0
    %v635 = vadd.f32 %v597, %v633
    %v636 = vtanh.pop %v635
    %vm637 = vcmp.ne.f32.partialorder %v636, %v636
    %v638 = vsel %vm637, 1, 0
    %v639 = vcvt.s32.f32 %v638
    %v640 = vadd.f32 %v639, 0.0
    %v641 = vld [vmem:[%s234] sm:$0xff]
    %642 = vmatpush.msra.mxu0 %v614
    %643 = vmatpush.msra.mxu0 %v613
    %644 = vmatpush.msra.mxu0 %v612
    %645 = vmatpush.msra.mxu0 %v611
    %646 = vmatpush.msra.mxu0 %v610
    %647 = vmatpush.msra.mxu0 %v609
    %648 = vmatpush.msra.mxu0 %v608
    %649 = vmatpush.msra.mxu0 %v607
    %650 = vmatpush.msra.mxu0 %v606
    %651 = vmatpush.msra.mxu0 %v605
    %652 = vmatpush.msra.mxu0 %v604
    %653 = vmatpush.msra.mxu0 %v603
    %654 = vmatpush.msra.mxu0 %v602
    %655 = vmatpush.msra.mxu0 %v601
    %656 = vmatpush.msra.mxu0 %v600
    %657 = vmatpush.msra.mxu0 %v599
    %658 = vmatmul.f32.gmra.mxu0 %v636
    %v659 = vpop.f32.mrf.mxu0
    %v660 = vadd.f32 0.0, %v659
    %661 = vdwg.mxu0
    %v662 = vadd.f32 %v641, %v660
    %v663 = vtanh.pop %v662
    %vm664 = vcmp.ne.f32.partialorder %v663, %v663
    %v665 = vsel %vm664, 1, 0
    %v666 = vcvt.s32.f32 %v665
    %v667 = vadd.f32 %v640, %v666
    %v668 = vld [vmem:[%s275] sm:$0xff]
    %669 = vmatpush.msra.mxu0 %v614
    %670 = vmatpush.msra.mxu0 %v613
    %671 = vmatpush.msra.mxu0 %v612
    %672 = vmatpush.msra.mxu0 %v611
    %673 = vmatpush.msra.mxu0 %v610
    %674 = vmatpush.msra.mxu0 %v609
    %675 = vmatpush.msra.mxu0 %v608
    %676 = vmatpush.msra.mxu0 %v607
    %677 = vmatpush.msra.mxu0 %v606
    %678 = vmatpush.msra.mxu0 %v605
    %679 = vmatpush.msra.mxu0 %v604
    %680 = vmatpush.msra.mxu0 %v603
    %681 = vmatpush.msra.mxu0 %v602
    %682 = vmatpush.msra.mxu0 %v601
    %683 = vmatpush.msra.mxu0 %v600
    %684 = vmatpush.msra.mxu0 %v599
    %685 = vmatmul.f32.gmra.mxu0 %v663
    %v686 = vpop.f32.mrf.mxu0
    %v687 = vadd.f32 0.0, %v686
    %688 = vdwg.mxu0
    %v689 = vadd.f32 %v668, %v687
    %v690 = vtanh.pop %v689
    %vm691 = vcmp.ne.f32.partialorder %v690, %v690
    %v692 = vsel %vm691, 1, 0
    %v693 = vcvt.s32.f32 %v692
    %v694 = vadd.f32 %v667, %v693
    %v695 = vld [vmem:[%s316] sm:$0xff]
    %696 = vmatpush.msra.mxu0 %v614
    %697 = vmatpush.msra.mxu0 %v613
    %698 = vmatpush.msra.mxu0 %v612
    %699 = vmatpush.msra.mxu0 %v611
    %700 = vmatpush.msra.mxu0 %v610
    %701 = vmatpush.msra.mxu0 %v609
    %702 = vmatpush.msra.mxu0 %v608
    %703 = vmatpush.msra.mxu0 %v607
    %704 = vmatpush.msra.mxu0 %v606
    %705 = vmatpush.msra.mxu0 %v605
    %706 = vmatpush.msra.mxu0 %v604
    %707 = vmatpush.msra.mxu0 %v603
    %708 = vmatpush.msra.mxu0 %v602
    %709 = vmatpush.msra.mxu0 %v601
    %710 = vmatpush.msra.mxu0 %v600
    %711 = vmatpush.msra.mxu0 %v599
    %712 = vmatmul.f32.gmra.mxu0 %v690
    %v713 = vpop.f32.mrf.mxu0
    %v714 = vadd.f32 0.0, %v713
    %715 = vdwg.mxu0
    %v716 = vadd.f32 %v695, %v714
    %v717 = vtanh.pop %v716
    %vm718 = vcmp.ne.f32.partialorder %v717, %v717
    %v719 = vsel %vm718, 1, 0
    %v720 = vcvt.s32.f32 %v719
    %v721 = vadd.f32 %v694, %v720
    %v722 = vld [vmem:[%s357] sm:$0xff]
    %723 = vmatpush.msra.mxu0 %v614
    %724 = vmatpush.msra.mxu0 %v613
    %725 = vmatpush.msra.mxu0 %v612
    %726 = vmatpush.msra.mxu0 %v611
    %727 = vmatpush.msra.mxu0 %v610
    %728 = vmatpush.msra.mxu0 %v609
    %729 = vmatpush.msra.mxu0 %v608
    %730 = vmatpush.msra.mxu0 %v607
    %731 = vmatpush.msra.mxu0 %v606
    %732 = vmatpush.msra.mxu0 %v605
    %733 = vmatpush.msra.mxu0 %v604
    %734 = vmatpush.msra.mxu0 %v603
    %735 = vmatpush.msra.mxu0 %v602
    %736 = vmatpush.msra.mxu0 %v601
    %737 = vmatpush.msra.mxu0 %v600
    %738 = vmatpush.msra.mxu0 %v599
    %739 = vmatmul.f32.gmra.mxu0 %v717
    %v740 = vpop.f32.mrf.mxu0
    %v741 = vadd.f32 0.0, %v740
    %742 = vdwg.mxu0
    %v743 = vadd.f32 %v722, %v741
    %v744 = vtanh.pop %v743
    %vm745 = vcmp.ne.f32.partialorder %v744, %v744
    %v746 = vsel %vm745, 1, 0
    %v747 = vcvt.s32.f32 %v746
    %v748 = vadd.f32 %v721, %v747
    %v749 = vld [vmem:[%s398] sm:$0xff]
    %750 = vmatpush.msra.mxu0 %v614
    %751 = vmatpush.msra.mxu0 %v613
    %752 = vmatpush.msra.mxu0 %v612
    %753 = vmatpush.msra.mxu0 %v611
    %754 = vmatpush.msra.mxu0 %v610
    %755 = vmatpush.msra.mxu0 %v609
    %756 = vmatpush.msra.mxu0 %v608
    %757 = vmatpush.msra.mxu0 %v607
    %758 = vmatpush.msra.mxu0 %v606
    %759 = vmatpush.msra.mxu0 %v605
    %760 = vmatpush.msra.mxu0 %v604
    %761 = vmatpush.msra.mxu0 %v603
    %762 = vmatpush.msra.mxu0 %v602
    %763 = vmatpush.msra.mxu0 %v601
    %764 = vmatpush.msra.mxu0 %v600
    %765 = vmatpush.msra.mxu0 %v599
    %766 = vmatmul.f32.gmra.mxu0 %v744
    %v767 = vpop.f32.mrf.mxu0
    %v768 = vadd.f32 0.0, %v767
    %769 = vdwg.mxu0
    %v770 = vadd.f32 %v749, %v768
    %v771 = vtanh.pop %v770
    %vm772 = vcmp.ne.f32.partialorder %v771, %v771
    %v773 = vsel %vm772, 1, 0
    %v774 = vcvt.s32.f32 %v773
    %v775 = vadd.f32 %v748, %v774
    %v776 = vld [vmem:[%s439] sm:$0xff]
    %777 = vmatpush.msra.mxu0 %v614
    %778 = vmatpush.msra.mxu0 %v613
    %779 = vmatpush.msra.mxu0 %v612
    %780 = vmatpush.msra.mxu0 %v611
    %781 = vmatpush.msra.mxu0 %v610
    %782 = vmatpush.msra.mxu0 %v609
    %783 = vmatpush.msra.mxu0 %v608
    %784 = vmatpush.msra.mxu0 %v607
    %785 = vmatpush.msra.mxu0 %v606
    %786 = vmatpush.msra.mxu0 %v605
    %787 = vmatpush.msra.mxu0 %v604
    %788 = vmatpush.msra.mxu0 %v603
    %789 = vmatpush.msra.mxu0 %v602
    %790 = vmatpush.msra.mxu0 %v601
    %791 = vmatpush.msra.mxu0 %v600
    %792 = vmatpush.msra.mxu0 %v599
    %793 = vmatmul.f32.gmra.mxu0 %v771
    %v794 = vpop.f32.mrf.mxu0
    %v795 = vadd.f32 0.0, %v794
    %796 = vdwg.mxu0
    %v797 = vadd.f32 %v776, %v795
    %v798 = vtanh.pop %v797
    %vm799 = vcmp.ne.f32.partialorder %v798, %v798
    %v800 = vsel %vm799, 1, 0
    %v801 = vcvt.s32.f32 %v800
    %v802 = vadd.f32 %v775, %v801
    %v803 = vld [vmem:[%s480] sm:$0xff]
    %804 = vmatpush.msra.mxu0 %v614
    %805 = vmatpush.msra.mxu0 %v613
    %806 = vmatpush.msra.mxu0 %v612
    %807 = vmatpush.msra.mxu0 %v611
    %808 = vmatpush.msra.mxu0 %v610
    %809 = vmatpush.msra.mxu0 %v609
    %810 = vmatpush.msra.mxu0 %v608
    %811 = vmatpush.msra.mxu0 %v607
    %812 = vmatpush.msra.mxu0 %v606
    %813 = vmatpush.msra.mxu0 %v605
    %814 = vmatpush.msra.mxu0 %v604
    %815 = vmatpush.msra.mxu0 %v603
    %816 = vmatpush.msra.mxu0 %v602
    %817 = vmatpush.msra.mxu0 %v601
    %818 = vmatpush.msra.mxu0 %v600
    %819 = vmatpush.msra.mxu0 %v599
    %820 = vmatmul.f32.gmra.mxu0 %v798
    %v821 = vpop.f32.mrf.mxu0
    %v822 = vadd.f32 0.0, %v821
    %823 = vdwg.mxu0
    %v824 = vadd.f32 %v803, %v822
    %v825 = vtanh.pop %v824
    %vm826 = vcmp.ne.f32.partialorder %v825, %v825
    %v827 = vsel %vm826, 1, 0
    %v828 = vcvt.s32.f32 %v827
    %v829 = vadd.f32 %v802, %v828
    %v830 = vrot.slane %v829, 4
    %v831 = vadd.f32 %v829, %v830
    %v832 = vrot.slane %v831, 2
    %v833 = vadd.f32 %v831, %v832
    %v834 = vrot.slane %v833, 1
    %v835 = vadd.f32 %v833, %v834
    %836 = vst [vmem:[%s6] sm:$0x1] %v835
    %v837 = vld [vmem:[#allocation5 + $0x80] sm:$0xff]
    %v838 = vld [vmem:[#allocation5 + $0x88] sm:$0xff]
    %v839 = vld [vmem:[#allocation5 + $0x90] sm:$0xff]
    %v840 = vld [vmem:[#allocation5 + $0x98] sm:$0xff]
    %v841 = vld [vmem:[#allocation5 + $0xa0] sm:$0xff]
    %v842 = vld [vmem:[#allocation5 + $0xa8] sm:$0xff]
    %v843 = vld [vmem:[#allocation5 + $0xb0] sm:$0xff]
    %v844 = vld [vmem:[#allocation5 + $0xb8] sm:$0xff]
    %v845 = vld [vmem:[#allocation5 + $0xc0] sm:$0xff]
    %v846 = vld [vmem:[#allocation5 + $0xc8] sm:$0xff]
    %v847 = vld [vmem:[#allocation5 + $0xd0] sm:$0xff]
    %v848 = vld [vmem:[#allocation5 + $0xd8] sm:$0xff]
    %v849 = vld [vmem:[#allocation5 + $0xe0] sm:$0xff]
    %v850 = vld [vmem:[#allocation5 + $0xe8] sm:$0xff]
    %v851 = vld [vmem:[#allocation5 + $0xf0] sm:$0xff]
    %v852 = vld [vmem:[#allocation5 + $0xf8] sm:$0xff]
    %v853 = vld [vmem:[#allocation5 + $0x100] sm:$0xff]
    %v854 = vld [vmem:[#allocation5 + $0x108] sm:$0xff]
    %v855 = vld [vmem:[#allocation5 + $0x110] sm:$0xff]
    %v856 = vld [vmem:[#allocation5 + $0x118] sm:$0xff]
    %v857 = vld [vmem:[#allocation5 + $0x120] sm:$0xff]
    %v858 = vld [vmem:[#allocation5 + $0x128] sm:$0xff]
    %v859 = vld [vmem:[#allocation5 + $0x130] sm:$0xff]
    %v860 = vld [vmem:[#allocation5 + $0x138] sm:$0xff]
    %v861 = vld [vmem:[#allocation5 + $0x140] sm:$0xff]
    %v862 = vld [vmem:[#allocation5 + $0x148] sm:$0xff]
    %v863 = vld [vmem:[#allocation5 + $0x150] sm:$0xff]
    %v864 = vld [vmem:[#allocation5 + $0x158] sm:$0xff]
    %v865 = vld [vmem:[#allocation5 + $0x160] sm:$0xff]
    %v866 = vld [vmem:[#allocation5 + $0x168] sm:$0xff]
    %v867 = vld [vmem:[#allocation5 + $0x170] sm:$0xff]
    %v868 = vld [vmem:[#allocation5 + $0x178] sm:$0xff]
    %v869 = vld [vmem:[#allocation5 + $0x180] sm:$0xff]
    %v870 = vld [vmem:[#allocation5 + $0x188] sm:$0xff]
    %v871 = vld [vmem:[#allocation5 + $0x190] sm:$0xff]
    %v872 = vld [vmem:[#allocation5 + $0x198] sm:$0xff]
    %v873 = vld [vmem:[#allocation5 + $0x1a0] sm:$0xff]
    %v874 = vld [vmem:[#allocation5 + $0x1a8] sm:$0xff]
    %v875 = vld [vmem:[#allocation5 + $0x1b0] sm:$0xff]
    %v876 = vld [vmem:[#allocation5 + $0x1b8] sm:$0xff]
    %v877 = vld [vmem:[#allocation5 + $0x1c0] sm:$0xff]
    %v878 = vld [vmem:[#allocation5 + $0x1c8] sm:$0xff]
    %v879 = vld [vmem:[#allocation5 + $0x1d0] sm:$0xff]
    %v880 = vld [vmem:[#allocation5 + $0x1d8] sm:$0xff]
    %v881 = vld [vmem:[#allocation5 + $0x1e0] sm:$0xff]
    %v882 = vld [vmem:[#allocation5 + $0x1e8] sm:$0xff]
    %v883 = vld [vmem:[#allocation5 + $0x1f0] sm:$0xff]
    %v884 = vld [vmem:[#allocation5 + $0x1f8] sm:$0xff]
    %885 = vmatpush.msra.mxu0 %v852
    %886 = vmatpush.msra.mxu0 %v851
    %887 = vmatpush.msra.mxu0 %v850
    %888 = vmatpush.msra.mxu0 %v849
    %889 = vmatpush.msra.mxu0 %v848
    %890 = vmatpush.msra.mxu0 %v847
    %891 = vmatpush.msra.mxu0 %v846
    %892 = vmatpush.msra.mxu0 %v845
    %893 = vmatpush.msra.mxu0 %v844
    %894 = vmatpush.msra.mxu0 %v843
    %895 = vmatpush.msra.mxu0 %v842
    %896 = vmatpush.msra.mxu0 %v841
    %897 = vmatpush.msra.mxu0 %v840
    %898 = vmatpush.msra.mxu0 %v839
    %899 = vmatpush.msra.mxu0 %v838
    %900 = vmatpush.msra.mxu0 %v837
    %901 = vmatmul.f32.gmra.mxu0 %v825
    %v902 = vpop.f32.mrf.mxu0
    %v903 = vadd.f32 0.0, %v902
    %904 = vdwg.mxu0
    %v905 = vadd.f32 %v91, %v903
    %v906 = vmax.f32 %v905, 0.0
    %v907 = vld [vmem:[%s4 + $0x3] sm:$0x1]
    %v908 = vperm.slane %v907, 0
    %909 = vmatpush.msra.mxu0 %v868
    %910 = vmatpush.msra.mxu0 %v867
    %911 = vmatpush.msra.mxu0 %v866
    %912 = vmatpush.msra.mxu0 %v865
    %913 = vmatpush.msra.mxu0 %v864
    %914 = vmatpush.msra.mxu0 %v863
    %915 = vmatpush.msra.mxu0 %v862
    %916 = vmatpush.msra.mxu0 %v861
    %917 = vmatpush.msra.mxu0 %v860
    %918 = vmatpush.msra.mxu0 %v859
    %919 = vmatpush.msra.mxu0 %v858
    %920 = vmatpush.msra.mxu0 %v857
    %921 = vmatpush.msra.mxu0 %v856
    %922 = vmatpush.msra.mxu0 %v855
    %923 = vmatpush.msra.mxu0 %v854
    %924 = vmatpush.msra.mxu0 %v853
    %925 = vmatmul.f32.gmra.mxu0 %v906
    %v926 = vpop.f32.mrf.mxu0
    %v927 = vadd.f32 %v908, %v926
    %928 = vdwg.mxu0
    %v929 = vmax.f32 %v927, 0.0
    %v930 = vld [vmem:[%s4 + $0x4] sm:$0x1]
    %v931 = vperm.slane %v930, 0
    %932 = vmatpush.msra.mxu0 %v884
    %933 = vmatpush.msra.mxu0 %v883
    %934 = vmatpush.msra.mxu0 %v882
    %935 = vmatpush.msra.mxu0 %v881
    %936 = vmatpush.msra.mxu0 %v880
    %937 = vmatpush.msra.mxu0 %v879
    %938 = vmatpush.msra.mxu0 %v878
    %939 = vmatpush.msra.mxu0 %v877
    %940 = vmatpush.msra.mxu0 %v876
    %941 = vmatpush.msra.mxu0 %v875
    %942 = vmatpush.msra.mxu0 %v874
    %943 = vmatpush.msra.mxu0 %v873
    %944 = vmatpush.msra.mxu0 %v872
    %945 = vmatpush.msra.mxu0 %v871
    %946 = vmatpush.msra.mxu0 %v870
    %947 = vmatpush.msra.mxu0 %v869
    %948 = vmatmul.f32.gmra.mxu0 %v929
    %v949 = vpop.f32.mrf.mxu0
    %v950 = vadd.f32 %v931, %v949
    %951 = vdwg.mxu0
    %952 = vst [vmem:[%s5] sm:$0xff] %v950
    // Predicated region
    $region30: #{_forward_impl.1} parent=1 // pred_check
      _
    $region31: #{_forward_impl.1} parent=1 // pred_check_branch
      %954 = sbr.rel (0) target = $region33
    $region32: #{_forward_impl.1} parent=1 // pred_region
      _
    $region33: #{_forward_impl.1} parent=1 // pred_fallthru
      _
    // Predicated region
    $region34: #{_forward_impl.1} parent=1 // pred_check
      _
    $region35: #{_forward_impl.1} parent=1 // pred_check_branch
      %956 = sbr.rel (0) target = $region37
    $region36: #{_forward_impl.1} parent=1 // pred_region
      _
    $region37: #{_forward_impl.1} parent=1 // pred_fallthru
      _
    // Predicated region
    $region38: #{_forward_impl.1} parent=1 // pred_check
      _
    $region39: #{_forward_impl.1} parent=1 // pred_check_branch
      %958 = sbr.rel (0) target = $region41
    $region40: #{_forward_impl.1} parent=1 // pred_region
      _
    $region41: #{_forward_impl.1} parent=1 // pred_fallthru
      _
    // Predicated region
    $region42: #{_forward_impl.1} parent=1 // pred_check
      _
    $region43: #{_forward_impl.1} parent=1 // pred_check_branch
      %960 = sbr.rel (0) target = $region45
    $region44: #{_forward_impl.1} parent=1 // pred_region
      _
    $region45: #{_forward_impl.1} parent=1 // pred_fallthru
      _
    %961 = vsyncpa [#allocation4], 1
    %962 = vsyncpa [#allocation6], 1

</llo_original>
